<compile_context>
chip_gen: v7x
topology: tpu7x:2x2x1
jax: 0.10.0
libtpu: 0.0.40
codegen_flags: <defaults>
</compile_context>

<pallas_src>
import functools

import jax
import jax.numpy as jnp
from jax.experimental import pallas as pl
from jax.experimental.pallas import tpu as pltpu


def _round_up(x, m):
    return (x + m - 1) // m * m


# ----------------------------------------------------------------------------
# Fused TCN kernel: the whole stack of TemporalBlocks in one pallas_call.
# ----------------------------------------------------------------------------
def _make_tcn_kernel(layer_meta, K, L, BL, pad_w):
    """layer_meta: tuple of (dilation, padding, has_downsample) per layer."""

    def kernel(x_ref, *refs):
        # Unpack per-layer weight refs (4 or 6 each), then the output ref.
        idx = 0
        layer_refs = []
        for (_, _, has_ds) in layer_meta:
            n = 6 if has_ds else 4
            layer_refs.append(refs[idx:idx + n])
            idx += n
        out_ref = refs[idx]

        # Per-sample time index (samples are stacked along the lane axis).
        col = jax.lax.broadcasted_iota(jnp.int32, (1, BL), 1) % L

        def shifted_tap(ext, s):
            # tap[:, b*L + t] = x[:, b*L + t - s] if 0 <= t - s < L else 0.
            tap = ext[:, pad_w - s:pad_w - s + BL]
            if s == 0:
                return tap
            mask = (col >= s) & (col < L + s)
            return jnp.where(mask, tap, 0.0)

        def dilated_conv(w_ref, b_ref, x_f32, dil, pad):
            cp = x_f32.shape[0]
            # In-value zero halo (tile-aligned concat, no scratch round-trip).
            zeros = jnp.zeros((cp, pad_w), jnp.float32)
            ext = jnp.concatenate([zeros, x_f32, zeros], axis=1)
            # im2col: stack the K taps along the (sublane-aligned) channel axis
            # and do a single bf16 MXU matmul with f32 accumulation.
            taps = [shifted_tap(ext, pad - k * dil) for k in range(K)]
            stk = taps[0] if K == 1 else jnp.concatenate(taps, axis=0)
            acc = jnp.dot(w_ref[...], stk.astype(jnp.bfloat16),
                          preferred_element_type=jnp.float32)
            return acc + b_ref[...]

        cur = x_ref[...].astype(jnp.float32)          # (C0_p, BL) running act.
        for (dil, pad, has_ds), lr in zip(layer_meta, layer_refs):
            if has_ds:
                w1, b1, w2, b2, wds, bds = lr
            else:
                w1, b1, w2, b2 = lr
            h = jnp.maximum(dilated_conv(w1, b1, cur, dil, pad), 0.0)
            # TODO(synk): nn.Dropout(p=0.2) is identity in eval mode; training
            # time stochastic dropout is not implemented.
            o = jnp.maximum(dilated_conv(w2, b2, h, dil, pad), 0.0)
            if has_ds:
                res = jnp.dot(wds[...], cur.astype(jnp.bfloat16),
                              preferred_element_type=jnp.float32) + bds[...]
            else:
                res = cur
            cur = jnp.maximum(o + res, 0.0)           # final block ReLU
        out_ref[...] = cur.astype(out_ref.dtype)

    return kernel


# ----------------------------------------------------------------------------
# Wrapper: parameter packing, batch/lane layout, pallas_call, output glue.
# ----------------------------------------------------------------------------
def _flatten_conv_weight(w, c_out_p, c_in_p):
    """(C_out, C_in, K) f32 -> (C_out_p, K*C_in_p) bf16 matching tap stacking."""
    c_out, c_in, k = w.shape
    wp = jnp.pad(w, ((0, c_out_p - c_out), (0, c_in_p - c_in), (0, 0)))
    return (jnp.transpose(wp, (0, 2, 1))
            .reshape(c_out_p, k * c_in_p).astype(jnp.bfloat16))


def _pad_bias(b, c_out_p):
    return jnp.pad(b, (0, c_out_p - b.shape[0])).reshape(c_out_p, 1).astype(
        jnp.float32)


def temporal_conv_net(x, params, padding_sizes, dilation_sizes,
                      samples_per_step=2):
    """x: (N, C_in, L) f32; params: list of (w1, b1, w2, b2, wds, bds)."""
    N, C_in, L = x.shape
    K = params[0][0].shape[2]

    for pad, dil in zip(padding_sizes, dilation_sizes):
        if 2 * pad != dil * (K - 1):
            raise ValueError(
                "TemporalBlock requires 2*padding == dilation*(filter_size-1) "
                "so the residual add is shape-compatible.")

    blk = min(samples_per_step, N)
    if N % blk != 0:
        blk = 1
    BL = blk * L
    pad_w = max(128, _round_up(max(padding_sizes), 128))  # aligned zero halo

    # Pad channel counts to multiples of 8 (sublane tile) -> aligned concats.
    c_in, c_in_p = C_in, _round_up(C_in, 8)
    c0_p = c_in_p
    layer_meta, w_inputs, w_specs = [], [], []
    for i, (w1, b1, w2, b2, wds, bds) in enumerate(params):
        c_out = w1.shape[0]
        c_out_p = _round_up(c_out, 8)
        has_ds = wds is not None
        layer_meta.append((dilation_sizes[i], padding_sizes[i], has_ds))

        layer_inputs = [
            _flatten_conv_weight(w1, c_out_p, c_in_p), _pad_bias(b1, c_out_p),
            _flatten_conv_weight(w2, c_out_p, c_out_p), _pad_bias(b2, c_out_p),
        ]
        if has_ds:
            wdsp = jnp.pad(
                wds[:, :, 0],
                ((0, c_out_p - c_out), (0, c_in_p - c_in))).astype(jnp.bfloat16)
            layer_inputs += [wdsp, _pad_bias(bds, c_out_p)]
        w_inputs += layer_inputs
        w_specs += [pl.BlockSpec(a.shape, lambda n: (0, 0))
                    for a in layer_inputs]
        c_in, c_in_p = c_out, c_out_p
    c_last, c_last_p = c_in, c_in_p

    # Lane-dense input slab: (C0_p, N*L) bf16, samples contiguous along lanes.
    x_p = jnp.pad(x, ((0, 0), (0, c0_p - C_in), (0, 0))).astype(jnp.bfloat16)
    x_slab = jnp.transpose(x_p, (1, 0, 2)).reshape(c0_p, N * L)

    kernel = _make_tcn_kernel(tuple(layer_meta), K, L, BL, pad_w)
    out_slab = pl.pallas_call(
        kernel,
        out_shape=jax.ShapeDtypeStruct((c_last_p, N * L), jnp.float32),
        grid_spec=pltpu.PrefetchScalarGridSpec(
            num_scalar_prefetch=0,
            grid=(N // blk,),
            in_specs=[pl.BlockSpec((c0_p, BL), lambda n: (0, n))] + w_specs,
            out_specs=pl.BlockSpec((c_last_p, BL), lambda n: (0, n)),
        ),
        compiler_params=pltpu.CompilerParams(
            dimension_semantics=("parallel",)),
    )(x_slab, *w_inputs)

    # Layout plumbing + temporal mean in plain JAX (keeps kernel stores dense).
    out_nlc = jnp.transpose(out_slab.reshape(c_last_p, N, L),
                            (1, 2, 0))[:, :, :c_last]        # (N, L, C_last)
    tcn_avg = jnp.mean(out_nlc, axis=1)                      # (N, C_last)
    return out_nlc, tcn_avg


# ----------------------------------------------------------------------------
# Deterministic parameter construction (synthetic, no checkpoint load)
# ----------------------------------------------------------------------------
def make_weightnorm_conv_params(key, C_out, C_in, K):
    kv, kg, kb = jax.random.split(key, 3)
    v = jax.random.normal(kv, (C_out, C_in, K), jnp.float32) * 0.01
    g = jax.random.uniform(kg, (C_out,), jnp.float32, 0.5, 1.5)
    norm = jnp.sqrt(jnp.sum(v * v, axis=(1, 2), keepdims=True))
    w = g[:, None, None] * v / norm                         # weight_norm
    bound = 1.0 / jnp.sqrt(float(C_in * K))
    b = jax.random.uniform(kb, (C_out,), jnp.float32, -bound, bound)
    return w, b


def build_tcn_params(key, input_units, num_filters, filter_size):
    params = []
    in_c = input_units
    for out_c in num_filters:
        key, k1, k2, k3 = jax.random.split(key, 4)
        w1, b1 = make_weightnorm_conv_params(k1, out_c, in_c, filter_size)
        w2, b2 = make_weightnorm_conv_params(k2, out_c, out_c, filter_size)
        if in_c != out_c:
            ka, kb = jax.random.split(k3)
            wds = jax.random.normal(ka, (out_c, in_c, 1), jnp.float32) * 0.01
            bound = 1.0 / jnp.sqrt(float(in_c))
            bds = jax.random.uniform(kb, (out_c,), jnp.float32, -bound, bound)
        else:
            wds, bds = None, None
        params.append((w1, b1, w2, b2, wds, bds))
        in_c = out_c
    return params


# ----------------------------------------------------------------------------
# Pure-JAX reference (mirrors the kernel's bf16-operand / f32-accum math)
# ----------------------------------------------------------------------------
def _conv1d_ref(x, w, b, pad, dil):
    out = jax.lax.conv_general_dilated(
        x.astype(jnp.bfloat16), w.astype(jnp.bfloat16),
        window_strides=(1,), padding=[(pad, pad)], rhs_dilation=(dil,),
        dimension_numbers=('NCH', 'OIH', 'NCH'),
        preferred_element_type=jnp.float32)
    return out + b[None, :, None]


def tcn_ref(x, params, padding_sizes, dilation_sizes):
    out = x.astype(jnp.bfloat16).astype(jnp.float32)   # matches bf16 input DMA
    for i, (w1, b1, w2, b2, wds, bds) in enumerate(params):
        pad, dil = padding_sizes[i], dilation_sizes[i]
        h = jax.nn.relu(_conv1d_ref(out, w1, b1, pad, dil))
        o = jax.nn.relu(_conv1d_ref(h, w2, b2, pad, dil))
        res = out if wds is None else _conv1d_ref(out, wds, bds, 0, 1)
        out = jax.nn.relu(o + res)
    tcn_out = jnp.transpose(out, (0, 2, 1))
    tcn_avg = jnp.mean(tcn_out, axis=1)
    return tcn_out, tcn_avg


# ----------------------------------------------------------------------------
if __name__ == "__main__":
    key = jax.random.PRNGKey(0)
    kx, kp = jax.random.split(key)

    # x is (batch, channels, seq); L=128 keeps the kernel output lane-dense.
    N, C_in, L = 4, 4, 128
    num_filters = [8, 16, 16]      # exercises both downsample & identity paths
    filter_size = 3
    dilation_sizes = [1, 2, 4]
    padding_sizes = [1, 2, 4]      # 2*pad == dil*(K-1) -> length preserved

    x = jax.random.normal(kx, (N, C_in, L), jnp.float32)
    params = build_tcn_params(kp, C_in, num_filters, filter_size)

    fwd = jax.jit(functools.partial(
        temporal_conv_net, params=params,
        padding_sizes=padding_sizes, dilation_sizes=dilation_sizes,
        samples_per_step=2))
    tcn_out, tcn_avg = fwd(x)
    jax.block_until_ready((tcn_out, tcn_avg))

    ref_out, ref_avg = tcn_ref(x, params, padding_sizes, dilation_sizes)
    assert tcn_out.shape == (N, L, num_filters[-1])
    assert tcn_avg.shape == (N, num_filters[-1])
    assert jnp.allclose(tcn_out, ref_out, atol=2e-4, rtol=2e-4), \
        float(jnp.max(jnp.abs(tcn_out - ref_out)))
    assert jnp.allclose(tcn_avg, ref_avg, atol=2e-4, rtol=2e-4)

    print("KERNEL_OK")
</pallas_src>

<mosaic_0001>
module attributes {stable_mosaic.version = 11 : i64} {
  func.func @kernel(%arg0: i32, %arg1: memref<8x256xbf16, #tpu.memory_space<vmem>>, %arg2: memref<8x24xbf16, #tpu.memory_space<vmem>>, %arg3: memref<8x1xf32, #tpu.memory_space<vmem>>, %arg4: memref<8x24xbf16, #tpu.memory_space<vmem>>, %arg5: memref<8x1xf32, #tpu.memory_space<vmem>>, %arg6: memref<8x8xbf16, #tpu.memory_space<vmem>>, %arg7: memref<8x1xf32, #tpu.memory_space<vmem>>, %arg8: memref<16x24xbf16, #tpu.memory_space<vmem>>, %arg9: memref<16x1xf32, #tpu.memory_space<vmem>>, %arg10: memref<16x48xbf16, #tpu.memory_space<vmem>>, %arg11: memref<16x1xf32, #tpu.memory_space<vmem>>, %arg12: memref<16x8xbf16, #tpu.memory_space<vmem>>, %arg13: memref<16x1xf32, #tpu.memory_space<vmem>>, %arg14: memref<16x48xbf16, #tpu.memory_space<vmem>>, %arg15: memref<16x1xf32, #tpu.memory_space<vmem>>, %arg16: memref<16x48xbf16, #tpu.memory_space<vmem>>, %arg17: memref<16x1xf32, #tpu.memory_space<vmem>>, %arg18: memref<16x256xf32, #tpu.memory_space<vmem>>) attributes {dimension_semantics = [#tpu.dimension_semantics<parallel>], iteration_bounds = array<i64: 2>, scalar_prefetch = 0 : i64, scratch_operands = 0 : i64, tpu.core_type = #tpu.core_type<tc>, window_params = [{transform_indices = @transform_0, window_bounds = array<i64: 8, 256>}, {pipeline_mode = #tpu.pipeline_mode<synchronous>, transform_indices = @transform_1, window_bounds = array<i64: 8, 24>}, {pipeline_mode = #tpu.pipeline_mode<synchronous>, transform_indices = @transform_2, window_bounds = array<i64: 8, 1>}, {pipeline_mode = #tpu.pipeline_mode<synchronous>, transform_indices = @transform_3, window_bounds = array<i64: 8, 24>}, {pipeline_mode = #tpu.pipeline_mode<synchronous>, transform_indices = @transform_4, window_bounds = array<i64: 8, 1>}, {pipeline_mode = #tpu.pipeline_mode<synchronous>, transform_indices = @transform_5, window_bounds = array<i64: 8, 8>}, {pipeline_mode = #tpu.pipeline_mode<synchronous>, transform_indices = @transform_6, window_bounds = array<i64: 8, 1>}, {pipeline_mode = #tpu.pipeline_mode<synchronous>, transform_indices = @transform_7, window_bounds = array<i64: 16, 24>}, {pipeline_mode = #tpu.pipeline_mode<synchronous>, transform_indices = @transform_8, window_bounds = array<i64: 16, 1>}, {pipeline_mode = #tpu.pipeline_mode<synchronous>, transform_indices = @transform_9, window_bounds = array<i64: 16, 48>}, {pipeline_mode = #tpu.pipeline_mode<synchronous>, transform_indices = @transform_10, window_bounds = array<i64: 16, 1>}, {pipeline_mode = #tpu.pipeline_mode<synchronous>, transform_indices = @transform_11, window_bounds = array<i64: 16, 8>}, {pipeline_mode = #tpu.pipeline_mode<synchronous>, transform_indices = @transform_12, window_bounds = array<i64: 16, 1>}, {pipeline_mode = #tpu.pipeline_mode<synchronous>, transform_indices = @transform_13, window_bounds = array<i64: 16, 48>}, {pipeline_mode = #tpu.pipeline_mode<synchronous>, transform_indices = @transform_14, window_bounds = array<i64: 16, 1>}, {pipeline_mode = #tpu.pipeline_mode<synchronous>, transform_indices = @transform_15, window_bounds = array<i64: 16, 48>}, {pipeline_mode = #tpu.pipeline_mode<synchronous>, transform_indices = @transform_16, window_bounds = array<i64: 16, 1>}, {transform_indices = @transform_17, window_bounds = array<i64: 16, 256>}]} {
    %0 = tpu.iota {dimensions = array<i32: 1>} : vector<1x256xi32>
    %c128_i32 = arith.constant 128 : i32
    %c0_i32 = arith.constant 0 : i32
    %1 = arith.cmpi eq, %c128_i32, %c0_i32 : i32
    %c1_i32 = arith.constant 1 : i32
    %2 = arith.select %1, %c1_i32, %c128_i32 : i32
    %3 = vector.broadcast %2 : i32 to vector<1x256xi32>
    %4 = arith.remsi %0, %3 : vector<1x256xi32>
    %c0_i32_0 = arith.constant 0 : i32
    %5 = vector.broadcast %c0_i32_0 : i32 to vector<1x256xi32>
    %6 = arith.cmpi ne, %4, %5 : vector<1x256xi32>
    %c0_i32_1 = arith.constant 0 : i32
    %7 = vector.broadcast %c0_i32_1 : i32 to vector<1x256xi32>
    %8 = arith.cmpi slt, %4, %7 : vector<1x256xi32>
    %c0_i32_2 = arith.constant 0 : i32
    %9 = arith.cmpi slt, %2, %c0_i32_2 : i32
    %10 = vector.broadcast %9 : i1 to vector<1x256xi1>
    %11 = vector.broadcast %10 : vector<1x256xi1> to vector<1x256xi1>
    %12 = arith.xori %8, %11 : vector<1x256xi1>
    %13 = arith.andi %12, %6 : vector<1x256xi1>
    %14 = vector.broadcast %2 : i32 to vector<1x256xi32>
    %15 = arith.addi %4, %14 : vector<1x256xi32>
    %16 = arith.select %13, %15, %4 : vector<1x256xi1>, vector<1x256xi32>
    %c0 = arith.constant 0 : index
    %c0_3 = arith.constant 0 : index
    %17 = vector.load %arg1[%c0, %c0_3] : memref<8x256xbf16, #tpu.memory_space<vmem>>, vector<8x256xbf16>
    %18 = arith.extf %17 : vector<8x256xbf16> to vector<8x256xf32>
    %cst = arith.constant 0.000000e+00 : f32
    %19 = vector.broadcast %cst : f32 to vector<8x128xf32>
    %20 = tpu.concatenate %19, %18, %19 in 1 : vector<8x128xf32>, vector<8x256xf32>, vector<8x128xf32> -> vector<8x512xf32>
    %21 = vector.extract_strided_slice %20 {offsets = [0, 127], sizes = [8, 256], strides = [1, 1]} : vector<8x512xf32> to vector<8x256xf32>
    %c1_i32_4 = arith.constant 1 : i32
    %22 = vector.broadcast %c1_i32_4 : i32 to vector<1x256xi32>
    %23 = arith.cmpi sge, %16, %22 : vector<1x256xi32>
    %c129_i32 = arith.constant 129 : i32
    %24 = vector.broadcast %c129_i32 : i32 to vector<1x256xi32>
    %25 = arith.cmpi slt, %16, %24 : vector<1x256xi32>
    %26 = arith.andi %23, %25 : vector<1x256xi1>
    %cst_5 = arith.constant 0.000000e+00 : f32
    %27 = vector.shape_cast %26 : vector<1x256xi1> to vector<1x256xi1>
    %28 = vector.broadcast %27 : vector<1x256xi1> to vector<8x256xi1>
    %29 = vector.broadcast %cst_5 : f32 to vector<8x256xf32>
    %30 = arith.select %28, %21, %29 : vector<8x256xi1>, vector<8x256xf32>
    %31 = vector.extract_strided_slice %20 {offsets = [0, 128], sizes = [8, 256], strides = [1, 1]} : vector<8x512xf32> to vector<8x256xf32>
    %32 = vector.extract_strided_slice %20 {offsets = [0, 129], sizes = [8, 256], strides = [1, 1]} : vector<8x512xf32> to vector<8x256xf32>
    %c-1_i32 = arith.constant -1 : i32
    %33 = vector.broadcast %c-1_i32 : i32 to vector<1x256xi32>
    %34 = arith.cmpi sge, %16, %33 : vector<1x256xi32>
    %c127_i32 = arith.constant 127 : i32
    %35 = vector.broadcast %c127_i32 : i32 to vector<1x256xi32>
    %36 = arith.cmpi slt, %16, %35 : vector<1x256xi32>
    %37 = arith.andi %34, %36 : vector<1x256xi1>
    %cst_6 = arith.constant 0.000000e+00 : f32
    %38 = vector.shape_cast %37 : vector<1x256xi1> to vector<1x256xi1>
    %39 = vector.broadcast %38 : vector<1x256xi1> to vector<8x256xi1>
    %40 = vector.broadcast %cst_6 : f32 to vector<8x256xf32>
    %41 = arith.select %39, %32, %40 : vector<8x256xi1>, vector<8x256xf32>
    %42 = tpu.concatenate %30, %31, %41 in 0 : vector<8x256xf32>, vector<8x256xf32>, vector<8x256xf32> -> vector<24x256xf32>
    %c0_7 = arith.constant 0 : index
    %c0_8 = arith.constant 0 : index
    %43 = vector.load %arg2[%c0_7, %c0_8] : memref<8x24xbf16, #tpu.memory_space<vmem>>, vector<8x24xbf16>
    %44 = arith.truncf %42 : vector<24x256xf32> to vector<24x256xbf16>
    %cst_9 = arith.constant dense<0.000000e+00> : vector<8x256xf32>
    %45 = tpu.matmul %43, %44, %cst_9 {dimension_numbers = #tpu.dot_dimension_numbers<[1], [0], [0], [1], [0, 0, 1, 1], [], []>} : vector<8x24xbf16>, vector<24x256xbf16>, vector<8x256xf32> -> vector<8x256xf32>
    %c0_10 = arith.constant 0 : index
    %c0_11 = arith.constant 0 : index
    %46 = vector.load %arg3[%c0_10, %c0_11] : memref<8x1xf32, #tpu.memory_space<vmem>>, vector<8x1xf32>
    %47 = vector.broadcast %46 : vector<8x1xf32> to vector<8x256xf32>
    %48 = arith.addf %45, %47 : vector<8x256xf32>
    %cst_12 = arith.constant 0.000000e+00 : f32
    %49 = vector.broadcast %cst_12 : f32 to vector<8x256xf32>
    %50 = arith.maximumf %48, %49 : vector<8x256xf32>
    %cst_13 = arith.constant 0.000000e+00 : f32
    %51 = vector.broadcast %cst_13 : f32 to vector<8x128xf32>
    %52 = tpu.concatenate %51, %50, %51 in 1 : vector<8x128xf32>, vector<8x256xf32>, vector<8x128xf32> -> vector<8x512xf32>
    %53 = vector.extract_strided_slice %52 {offsets = [0, 127], sizes = [8, 256], strides = [1, 1]} : vector<8x512xf32> to vector<8x256xf32>
    %c1_i32_14 = arith.constant 1 : i32
    %54 = vector.broadcast %c1_i32_14 : i32 to vector<1x256xi32>
    %55 = arith.cmpi sge, %16, %54 : vector<1x256xi32>
    %c129_i32_15 = arith.constant 129 : i32
    %56 = vector.broadcast %c129_i32_15 : i32 to vector<1x256xi32>
    %57 = arith.cmpi slt, %16, %56 : vector<1x256xi32>
    %58 = arith.andi %55, %57 : vector<1x256xi1>
    %cst_16 = arith.constant 0.000000e+00 : f32
    %59 = vector.shape_cast %58 : vector<1x256xi1> to vector<1x256xi1>
    %60 = vector.broadcast %59 : vector<1x256xi1> to vector<8x256xi1>
    %61 = vector.broadcast %cst_16 : f32 to vector<8x256xf32>
    %62 = arith.select %60, %53, %61 : vector<8x256xi1>, vector<8x256xf32>
    %63 = vector.extract_strided_slice %52 {offsets = [0, 128], sizes = [8, 256], strides = [1, 1]} : vector<8x512xf32> to vector<8x256xf32>
    %64 = vector.extract_strided_slice %52 {offsets = [0, 129], sizes = [8, 256], strides = [1, 1]} : vector<8x512xf32> to vector<8x256xf32>
    %c-1_i32_17 = arith.constant -1 : i32
    %65 = vector.broadcast %c-1_i32_17 : i32 to vector<1x256xi32>
    %66 = arith.cmpi sge, %16, %65 : vector<1x256xi32>
    %c127_i32_18 = arith.constant 127 : i32
    %67 = vector.broadcast %c127_i32_18 : i32 to vector<1x256xi32>
    %68 = arith.cmpi slt, %16, %67 : vector<1x256xi32>
    %69 = arith.andi %66, %68 : vector<1x256xi1>
    %cst_19 = arith.constant 0.000000e+00 : f32
    %70 = vector.shape_cast %69 : vector<1x256xi1> to vector<1x256xi1>
    %71 = vector.broadcast %70 : vector<1x256xi1> to vector<8x256xi1>
    %72 = vector.broadcast %cst_19 : f32 to vector<8x256xf32>
    %73 = arith.select %71, %64, %72 : vector<8x256xi1>, vector<8x256xf32>
    %74 = tpu.concatenate %62, %63, %73 in 0 : vector<8x256xf32>, vector<8x256xf32>, vector<8x256xf32> -> vector<24x256xf32>
    %c0_20 = arith.constant 0 : index
    %c0_21 = arith.constant 0 : index
    %75 = vector.load %arg4[%c0_20, %c0_21] : memref<8x24xbf16, #tpu.memory_space<vmem>>, vector<8x24xbf16>
    %76 = arith.truncf %74 : vector<24x256xf32> to vector<24x256xbf16>
    %cst_22 = arith.constant dense<0.000000e+00> : vector<8x256xf32>
    %77 = tpu.matmul %75, %76, %cst_22 {dimension_numbers = #tpu.dot_dimension_numbers<[1], [0], [0], [1], [0, 0, 1, 1], [], []>} : vector<8x24xbf16>, vector<24x256xbf16>, vector<8x256xf32> -> vector<8x256xf32>
    %c0_23 = arith.constant 0 : index
    %c0_24 = arith.constant 0 : index
    %78 = vector.load %arg5[%c0_23, %c0_24] : memref<8x1xf32, #tpu.memory_space<vmem>>, vector<8x1xf32>
    %79 = vector.broadcast %78 : vector<8x1xf32> to vector<8x256xf32>
    %80 = arith.addf %77, %79 : vector<8x256xf32>
    %cst_25 = arith.constant 0.000000e+00 : f32
    %81 = vector.broadcast %cst_25 : f32 to vector<8x256xf32>
    %82 = arith.maximumf %80, %81 : vector<8x256xf32>
    %c0_26 = arith.constant 0 : index
    %c0_27 = arith.constant 0 : index
    %83 = vector.load %arg6[%c0_26, %c0_27] : memref<8x8xbf16, #tpu.memory_space<vmem>>, vector<8x8xbf16>
    %84 = arith.truncf %18 : vector<8x256xf32> to vector<8x256xbf16>
    %cst_28 = arith.constant dense<0.000000e+00> : vector<8x256xf32>
    %85 = tpu.matmul %83, %84, %cst_28 {dimension_numbers = #tpu.dot_dimension_numbers<[1], [0], [0], [1], [0, 0, 1, 1], [], []>} : vector<8x8xbf16>, vector<8x256xbf16>, vector<8x256xf32> -> vector<8x256xf32>
    %c0_29 = arith.constant 0 : index
    %c0_30 = arith.constant 0 : index
    %86 = vector.load %arg7[%c0_29, %c0_30] : memref<8x1xf32, #tpu.memory_space<vmem>>, vector<8x1xf32>
    %87 = vector.broadcast %86 : vector<8x1xf32> to vector<8x256xf32>
    %88 = arith.addf %85, %87 : vector<8x256xf32>
    %89 = arith.addf %82, %88 : vector<8x256xf32>
    %cst_31 = arith.constant 0.000000e+00 : f32
    %90 = vector.broadcast %cst_31 : f32 to vector<8x256xf32>
    %91 = arith.maximumf %89, %90 : vector<8x256xf32>
    %cst_32 = arith.constant 0.000000e+00 : f32
    %92 = vector.broadcast %cst_32 : f32 to vector<8x128xf32>
    %93 = tpu.concatenate %92, %91, %92 in 1 : vector<8x128xf32>, vector<8x256xf32>, vector<8x128xf32> -> vector<8x512xf32>
    %94 = vector.extract_strided_slice %93 {offsets = [0, 126], sizes = [8, 256], strides = [1, 1]} : vector<8x512xf32> to vector<8x256xf32>
    %c2_i32 = arith.constant 2 : i32
    %95 = vector.broadcast %c2_i32 : i32 to vector<1x256xi32>
    %96 = arith.cmpi sge, %16, %95 : vector<1x256xi32>
    %c130_i32 = arith.constant 130 : i32
    %97 = vector.broadcast %c130_i32 : i32 to vector<1x256xi32>
    %98 = arith.cmpi slt, %16, %97 : vector<1x256xi32>
    %99 = arith.andi %96, %98 : vector<1x256xi1>
    %cst_33 = arith.constant 0.000000e+00 : f32
    %100 = vector.shape_cast %99 : vector<1x256xi1> to vector<1x256xi1>
    %101 = vector.broadcast %100 : vector<1x256xi1> to vector<8x256xi1>
    %102 = vector.broadcast %cst_33 : f32 to vector<8x256xf32>
    %103 = arith.select %101, %94, %102 : vector<8x256xi1>, vector<8x256xf32>
    %104 = vector.extract_strided_slice %93 {offsets = [0, 128], sizes = [8, 256], strides = [1, 1]} : vector<8x512xf32> to vector<8x256xf32>
    %105 = vector.extract_strided_slice %93 {offsets = [0, 130], sizes = [8, 256], strides = [1, 1]} : vector<8x512xf32> to vector<8x256xf32>
    %c-2_i32 = arith.constant -2 : i32
    %106 = vector.broadcast %c-2_i32 : i32 to vector<1x256xi32>
    %107 = arith.cmpi sge, %16, %106 : vector<1x256xi32>
    %c126_i32 = arith.constant 126 : i32
    %108 = vector.broadcast %c126_i32 : i32 to vector<1x256xi32>
    %109 = arith.cmpi slt, %16, %108 : vector<1x256xi32>
    %110 = arith.andi %107, %109 : vector<1x256xi1>
    %cst_34 = arith.constant 0.000000e+00 : f32
    %111 = vector.shape_cast %110 : vector<1x256xi1> to vector<1x256xi1>
    %112 = vector.broadcast %111 : vector<1x256xi1> to vector<8x256xi1>
    %113 = vector.broadcast %cst_34 : f32 to vector<8x256xf32>
    %114 = arith.select %112, %105, %113 : vector<8x256xi1>, vector<8x256xf32>
    %115 = tpu.concatenate %103, %104, %114 in 0 : vector<8x256xf32>, vector<8x256xf32>, vector<8x256xf32> -> vector<24x256xf32>
    %c0_35 = arith.constant 0 : index
    %c0_36 = arith.constant 0 : index
    %116 = vector.load %arg8[%c0_35, %c0_36] : memref<16x24xbf16, #tpu.memory_space<vmem>>, vector<16x24xbf16>
    %117 = arith.truncf %115 : vector<24x256xf32> to vector<24x256xbf16>
    %cst_37 = arith.constant dense<0.000000e+00> : vector<16x256xf32>
    %118 = tpu.matmul %116, %117, %cst_37 {dimension_numbers = #tpu.dot_dimension_numbers<[1], [0], [0], [1], [0, 0, 1, 1], [], []>} : vector<16x24xbf16>, vector<24x256xbf16>, vector<16x256xf32> -> vector<16x256xf32>
    %c0_38 = arith.constant 0 : index
    %c0_39 = arith.constant 0 : index
    %119 = vector.load %arg9[%c0_38, %c0_39] : memref<16x1xf32, #tpu.memory_space<vmem>>, vector<16x1xf32>
    %120 = vector.broadcast %119 : vector<16x1xf32> to vector<16x256xf32>
    %121 = arith.addf %118, %120 : vector<16x256xf32>
    %cst_40 = arith.constant 0.000000e+00 : f32
    %122 = vector.broadcast %cst_40 : f32 to vector<16x256xf32>
    %123 = arith.maximumf %121, %122 : vector<16x256xf32>
    %cst_41 = arith.constant 0.000000e+00 : f32
    %124 = vector.broadcast %cst_41 : f32 to vector<16x128xf32>
    %125 = tpu.concatenate %124, %123, %124 in 1 : vector<16x128xf32>, vector<16x256xf32>, vector<16x128xf32> -> vector<16x512xf32>
    %126 = vector.extract_strided_slice %125 {offsets = [0, 126], sizes = [16, 256], strides = [1, 1]} : vector<16x512xf32> to vector<16x256xf32>
    %c2_i32_42 = arith.constant 2 : i32
    %127 = vector.broadcast %c2_i32_42 : i32 to vector<1x256xi32>
    %128 = arith.cmpi sge, %16, %127 : vector<1x256xi32>
    %c130_i32_43 = arith.constant 130 : i32
    %129 = vector.broadcast %c130_i32_43 : i32 to vector<1x256xi32>
    %130 = arith.cmpi slt, %16, %129 : vector<1x256xi32>
    %131 = arith.andi %128, %130 : vector<1x256xi1>
    %cst_44 = arith.constant 0.000000e+00 : f32
    %132 = vector.shape_cast %131 : vector<1x256xi1> to vector<1x256xi1>
    %133 = vector.broadcast %132 : vector<1x256xi1> to vector<16x256xi1>
    %134 = vector.broadcast %cst_44 : f32 to vector<16x256xf32>
    %135 = arith.select %133, %126, %134 : vector<16x256xi1>, vector<16x256xf32>
    %136 = vector.extract_strided_slice %125 {offsets = [0, 128], sizes = [16, 256], strides = [1, 1]} : vector<16x512xf32> to vector<16x256xf32>
    %137 = vector.extract_strided_slice %125 {offsets = [0, 130], sizes = [16, 256], strides = [1, 1]} : vector<16x512xf32> to vector<16x256xf32>
    %c-2_i32_45 = arith.constant -2 : i32
    %138 = vector.broadcast %c-2_i32_45 : i32 to vector<1x256xi32>
    %139 = arith.cmpi sge, %16, %138 : vector<1x256xi32>
    %c126_i32_46 = arith.constant 126 : i32
    %140 = vector.broadcast %c126_i32_46 : i32 to vector<1x256xi32>
    %141 = arith.cmpi slt, %16, %140 : vector<1x256xi32>
    %142 = arith.andi %139, %141 : vector<1x256xi1>
    %cst_47 = arith.constant 0.000000e+00 : f32
    %143 = vector.shape_cast %142 : vector<1x256xi1> to vector<1x256xi1>
    %144 = vector.broadcast %143 : vector<1x256xi1> to vector<16x256xi1>
    %145 = vector.broadcast %cst_47 : f32 to vector<16x256xf32>
    %146 = arith.select %144, %137, %145 : vector<16x256xi1>, vector<16x256xf32>
    %147 = tpu.concatenate %135, %136, %146 in 0 : vector<16x256xf32>, vector<16x256xf32>, vector<16x256xf32> -> vector<48x256xf32>
    %c0_48 = arith.constant 0 : index
    %c0_49 = arith.constant 0 : index
    %148 = vector.load %arg10[%c0_48, %c0_49] : memref<16x48xbf16, #tpu.memory_space<vmem>>, vector<16x48xbf16>
    %149 = arith.truncf %147 : vector<48x256xf32> to vector<48x256xbf16>
    %cst_50 = arith.constant dense<0.000000e+00> : vector<16x256xf32>
    %150 = tpu.matmul %148, %149, %cst_50 {dimension_numbers = #tpu.dot_dimension_numbers<[1], [0], [0], [1], [0, 0, 1, 1], [], []>} : vector<16x48xbf16>, vector<48x256xbf16>, vector<16x256xf32> -> vector<16x256xf32>
    %c0_51 = arith.constant 0 : index
    %c0_52 = arith.constant 0 : index
    %151 = vector.load %arg11[%c0_51, %c0_52] : memref<16x1xf32, #tpu.memory_space<vmem>>, vector<16x1xf32>
    %152 = vector.broadcast %151 : vector<16x1xf32> to vector<16x256xf32>
    %153 = arith.addf %150, %152 : vector<16x256xf32>
    %cst_53 = arith.constant 0.000000e+00 : f32
    %154 = vector.broadcast %cst_53 : f32 to vector<16x256xf32>
    %155 = arith.maximumf %153, %154 : vector<16x256xf32>
    %c0_54 = arith.constant 0 : index
    %c0_55 = arith.constant 0 : index
    %156 = vector.load %arg12[%c0_54, %c0_55] : memref<16x8xbf16, #tpu.memory_space<vmem>>, vector<16x8xbf16>
    %157 = arith.truncf %91 : vector<8x256xf32> to vector<8x256xbf16>
    %cst_56 = arith.constant dense<0.000000e+00> : vector<16x256xf32>
    %158 = tpu.matmul %156, %157, %cst_56 {dimension_numbers = #tpu.dot_dimension_numbers<[1], [0], [0], [1], [0, 0, 1, 1], [], []>} : vector<16x8xbf16>, vector<8x256xbf16>, vector<16x256xf32> -> vector<16x256xf32>
    %c0_57 = arith.constant 0 : index
    %c0_58 = arith.constant 0 : index
    %159 = vector.load %arg13[%c0_57, %c0_58] : memref<16x1xf32, #tpu.memory_space<vmem>>, vector<16x1xf32>
    %160 = vector.broadcast %159 : vector<16x1xf32> to vector<16x256xf32>
    %161 = arith.addf %158, %160 : vector<16x256xf32>
    %162 = arith.addf %155, %161 : vector<16x256xf32>
    %cst_59 = arith.constant 0.000000e+00 : f32
    %163 = vector.broadcast %cst_59 : f32 to vector<16x256xf32>
    %164 = arith.maximumf %162, %163 : vector<16x256xf32>
    %cst_60 = arith.constant 0.000000e+00 : f32
    %165 = vector.broadcast %cst_60 : f32 to vector<16x128xf32>
    %166 = tpu.concatenate %165, %164, %165 in 1 : vector<16x128xf32>, vector<16x256xf32>, vector<16x128xf32> -> vector<16x512xf32>
    %167 = vector.extract_strided_slice %166 {offsets = [0, 124], sizes = [16, 256], strides = [1, 1]} : vector<16x512xf32> to vector<16x256xf32>
    %c4_i32 = arith.constant 4 : i32
    %168 = vector.broadcast %c4_i32 : i32 to vector<1x256xi32>
    %169 = arith.cmpi sge, %16, %168 : vector<1x256xi32>
    %c132_i32 = arith.constant 132 : i32
    %170 = vector.broadcast %c132_i32 : i32 to vector<1x256xi32>
    %171 = arith.cmpi slt, %16, %170 : vector<1x256xi32>
    %172 = arith.andi %169, %171 : vector<1x256xi1>
    %cst_61 = arith.constant 0.000000e+00 : f32
    %173 = vector.shape_cast %172 : vector<1x256xi1> to vector<1x256xi1>
    %174 = vector.broadcast %173 : vector<1x256xi1> to vector<16x256xi1>
    %175 = vector.broadcast %cst_61 : f32 to vector<16x256xf32>
    %176 = arith.select %174, %167, %175 : vector<16x256xi1>, vector<16x256xf32>
    %177 = vector.extract_strided_slice %166 {offsets = [0, 128], sizes = [16, 256], strides = [1, 1]} : vector<16x512xf32> to vector<16x256xf32>
    %178 = vector.extract_strided_slice %166 {offsets = [0, 132], sizes = [16, 256], strides = [1, 1]} : vector<16x512xf32> to vector<16x256xf32>
    %c-4_i32 = arith.constant -4 : i32
    %179 = vector.broadcast %c-4_i32 : i32 to vector<1x256xi32>
    %180 = arith.cmpi sge, %16, %179 : vector<1x256xi32>
    %c124_i32 = arith.constant 124 : i32
    %181 = vector.broadcast %c124_i32 : i32 to vector<1x256xi32>
    %182 = arith.cmpi slt, %16, %181 : vector<1x256xi32>
    %183 = arith.andi %180, %182 : vector<1x256xi1>
    %cst_62 = arith.constant 0.000000e+00 : f32
    %184 = vector.shape_cast %183 : vector<1x256xi1> to vector<1x256xi1>
    %185 = vector.broadcast %184 : vector<1x256xi1> to vector<16x256xi1>
    %186 = vector.broadcast %cst_62 : f32 to vector<16x256xf32>
    %187 = arith.select %185, %178, %186 : vector<16x256xi1>, vector<16x256xf32>
    %188 = tpu.concatenate %176, %177, %187 in 0 : vector<16x256xf32>, vector<16x256xf32>, vector<16x256xf32> -> vector<48x256xf32>
    %c0_63 = arith.constant 0 : index
    %c0_64 = arith.constant 0 : index
    %189 = vector.load %arg14[%c0_63, %c0_64] : memref<16x48xbf16, #tpu.memory_space<vmem>>, vector<16x48xbf16>
    %190 = arith.truncf %188 : vector<48x256xf32> to vector<48x256xbf16>
    %cst_65 = arith.constant dense<0.000000e+00> : vector<16x256xf32>
    %191 = tpu.matmul %189, %190, %cst_65 {dimension_numbers = #tpu.dot_dimension_numbers<[1], [0], [0], [1], [0, 0, 1, 1], [], []>} : vector<16x48xbf16>, vector<48x256xbf16>, vector<16x256xf32> -> vector<16x256xf32>
    %c0_66 = arith.constant 0 : index
    %c0_67 = arith.constant 0 : index
    %192 = vector.load %arg15[%c0_66, %c0_67] : memref<16x1xf32, #tpu.memory_space<vmem>>, vector<16x1xf32>
    %193 = vector.broadcast %192 : vector<16x1xf32> to vector<16x256xf32>
    %194 = arith.addf %191, %193 : vector<16x256xf32>
    %cst_68 = arith.constant 0.000000e+00 : f32
    %195 = vector.broadcast %cst_68 : f32 to vector<16x256xf32>
    %196 = arith.maximumf %194, %195 : vector<16x256xf32>
    %cst_69 = arith.constant 0.000000e+00 : f32
    %197 = vector.broadcast %cst_69 : f32 to vector<16x128xf32>
    %198 = tpu.concatenate %197, %196, %197 in 1 : vector<16x128xf32>, vector<16x256xf32>, vector<16x128xf32> -> vector<16x512xf32>
    %199 = vector.extract_strided_slice %198 {offsets = [0, 124], sizes = [16, 256], strides = [1, 1]} : vector<16x512xf32> to vector<16x256xf32>
    %c4_i32_70 = arith.constant 4 : i32
    %200 = vector.broadcast %c4_i32_70 : i32 to vector<1x256xi32>
    %201 = arith.cmpi sge, %16, %200 : vector<1x256xi32>
    %c132_i32_71 = arith.constant 132 : i32
    %202 = vector.broadcast %c132_i32_71 : i32 to vector<1x256xi32>
    %203 = arith.cmpi slt, %16, %202 : vector<1x256xi32>
    %204 = arith.andi %201, %203 : vector<1x256xi1>
    %cst_72 = arith.constant 0.000000e+00 : f32
    %205 = vector.shape_cast %204 : vector<1x256xi1> to vector<1x256xi1>
    %206 = vector.broadcast %205 : vector<1x256xi1> to vector<16x256xi1>
    %207 = vector.broadcast %cst_72 : f32 to vector<16x256xf32>
    %208 = arith.select %206, %199, %207 : vector<16x256xi1>, vector<16x256xf32>
    %209 = vector.extract_strided_slice %198 {offsets = [0, 128], sizes = [16, 256], strides = [1, 1]} : vector<16x512xf32> to vector<16x256xf32>
    %210 = vector.extract_strided_slice %198 {offsets = [0, 132], sizes = [16, 256], strides = [1, 1]} : vector<16x512xf32> to vector<16x256xf32>
    %c-4_i32_73 = arith.constant -4 : i32
    %211 = vector.broadcast %c-4_i32_73 : i32 to vector<1x256xi32>
    %212 = arith.cmpi sge, %16, %211 : vector<1x256xi32>
    %c124_i32_74 = arith.constant 124 : i32
    %213 = vector.broadcast %c124_i32_74 : i32 to vector<1x256xi32>
    %214 = arith.cmpi slt, %16, %213 : vector<1x256xi32>
    %215 = arith.andi %212, %214 : vector<1x256xi1>
    %cst_75 = arith.constant 0.000000e+00 : f32
    %216 = vector.shape_cast %215 : vector<1x256xi1> to vector<1x256xi1>
    %217 = vector.broadcast %216 : vector<1x256xi1> to vector<16x256xi1>
    %218 = vector.broadcast %cst_75 : f32 to vector<16x256xf32>
    %219 = arith.select %217, %210, %218 : vector<16x256xi1>, vector<16x256xf32>
    %220 = tpu.concatenate %208, %209, %219 in 0 : vector<16x256xf32>, vector<16x256xf32>, vector<16x256xf32> -> vector<48x256xf32>
    %c0_76 = arith.constant 0 : index
    %c0_77 = arith.constant 0 : index
    %221 = vector.load %arg16[%c0_76, %c0_77] : memref<16x48xbf16, #tpu.memory_space<vmem>>, vector<16x48xbf16>
    %222 = arith.truncf %220 : vector<48x256xf32> to vector<48x256xbf16>
    %cst_78 = arith.constant dense<0.000000e+00> : vector<16x256xf32>
    %223 = tpu.matmul %221, %222, %cst_78 {dimension_numbers = #tpu.dot_dimension_numbers<[1], [0], [0], [1], [0, 0, 1, 1], [], []>} : vector<16x48xbf16>, vector<48x256xbf16>, vector<16x256xf32> -> vector<16x256xf32>
    %c0_79 = arith.constant 0 : index
    %c0_80 = arith.constant 0 : index
    %224 = vector.load %arg17[%c0_79, %c0_80] : memref<16x1xf32, #tpu.memory_space<vmem>>, vector<16x1xf32>
    %225 = vector.broadcast %224 : vector<16x1xf32> to vector<16x256xf32>
    %226 = arith.addf %223, %225 : vector<16x256xf32>
    %cst_81 = arith.constant 0.000000e+00 : f32
    %227 = vector.broadcast %cst_81 : f32 to vector<16x256xf32>
    %228 = arith.maximumf %226, %227 : vector<16x256xf32>
    %229 = arith.addf %228, %164 : vector<16x256xf32>
    %cst_82 = arith.constant 0.000000e+00 : f32
    %230 = vector.broadcast %cst_82 : f32 to vector<16x256xf32>
    %231 = arith.maximumf %229, %230 : vector<16x256xf32>
    %c0_83 = arith.constant 0 : index
    %c0_84 = arith.constant 0 : index
    %232 = vector.load %arg18[%c0_83, %c0_84] : memref<16x256xf32, #tpu.memory_space<vmem>>, vector<16x256xf32>
    tpu.vector_store %arg18[%c0_83, %c0_84], %231 {strides = array<i32>} : memref<16x256xf32, #tpu.memory_space<vmem>>, vector<16x256xf32>,
    return
  }
  func.func @transform_0(%arg0: i32) -> (i32, i32) {
    %c0_i32 = arith.constant 0 : i32
    %c0_i32_0 = arith.constant 0 : i32
    return %c0_i32, %arg0 : i32, i32
  }
  func.func @transform_1(%arg0: i32) -> (i32, i32) {
    %c0_i32 = arith.constant 0 : i32
    %c0_i32_0 = arith.constant 0 : i32
    %c0_i32_1 = arith.constant 0 : i32
    return %c0_i32, %c0_i32_0 : i32, i32
  }
  func.func @transform_2(%arg0: i32) -> (i32, i32) {
    %c0_i32 = arith.constant 0 : i32
    %c0_i32_0 = arith.constant 0 : i32
    %c0_i32_1 = arith.constant 0 : i32
    return %c0_i32, %c0_i32_0 : i32, i32
  }
  func.func @transform_3(%arg0: i32) -> (i32, i32) {
    %c0_i32 = arith.constant 0 : i32
    %c0_i32_0 = arith.constant 0 : i32
    %c0_i32_1 = arith.constant 0 : i32
    return %c0_i32, %c0_i32_0 : i32, i32
  }
  func.func @transform_4(%arg0: i32) -> (i32, i32) {
    %c0_i32 = arith.constant 0 : i32
    %c0_i32_0 = arith.constant 0 : i32
    %c0_i32_1 = arith.constant 0 : i32
    return %c0_i32, %c0_i32_0 : i32, i32
  }
  func.func @transform_5(%arg0: i32) -> (i32, i32) {
    %c0_i32 = arith.constant 0 : i32
    %c0_i32_0 = arith.constant 0 : i32
    %c0_i32_1 = arith.constant 0 : i32
    return %c0_i32, %c0_i32_0 : i32, i32
  }
  func.func @transform_6(%arg0: i32) -> (i32, i32) {
    %c0_i32 = arith.constant 0 : i32
    %c0_i32_0 = arith.constant 0 : i32
    %c0_i32_1 = arith.constant 0 : i32
    return %c0_i32, %c0_i32_0 : i32, i32
  }
  func.func @transform_7(%arg0: i32) -> (i32, i32) {
    %c0_i32 = arith.constant 0 : i32
    %c0_i32_0 = arith.constant 0 : i32
    %c0_i32_1 = arith.constant 0 : i32
    return %c0_i32, %c0_i32_0 : i32, i32
  }
  func.func @transform_8(%arg0: i32) -> (i32, i32) {
    %c0_i32 = arith.constant 0 : i32
    %c0_i32_0 = arith.constant 0 : i32
    %c0_i32_1 = arith.constant 0 : i32
    return %c0_i32, %c0_i32_0 : i32, i32
  }
  func.func @transform_9(%arg0: i32) -> (i32, i32) {
    %c0_i32 = arith.constant 0 : i32
    %c0_i32_0 = arith.constant 0 : i32
    %c0_i32_1 = arith.constant 0 : i32
    return %c0_i32, %c0_i32_0 : i32, i32
  }
  func.func @transform_10(%arg0: i32) -> (i32, i32) {
    %c0_i32 = arith.constant 0 : i32
    %c0_i32_0 = arith.constant 0 : i32
    %c0_i32_1 = arith.constant 0 : i32
    return %c0_i32, %c0_i32_0 : i32, i32
  }
  func.func @transform_11(%arg0: i32) -> (i32, i32) {
    %c0_i32 = arith.constant 0 : i32
    %c0_i32_0 = arith.constant 0 : i32
    %c0_i32_1 = arith.constant 0 : i32
    return %c0_i32, %c0_i32_0 : i32, i32
  }
  func.func @transform_12(%arg0: i32) -> (i32, i32) {
    %c0_i32 = arith.constant 0 : i32
    %c0_i32_0 = arith.constant 0 : i32
    %c0_i32_1 = arith.constant 0 : i32
    return %c0_i32, %c0_i32_0 : i32, i32
  }
  func.func @transform_13(%arg0: i32) -> (i32, i32) {
    %c0_i32 = arith.constant 0 : i32
    %c0_i32_0 = arith.constant 0 : i32
    %c0_i32_1 = arith.constant 0 : i32
    return %c0_i32, %c0_i32_0 : i32, i32
  }
  func.func @transform_14(%arg0: i32) -> (i32, i32) {
    %c0_i32 = arith.constant 0 : i32
    %c0_i32_0 = arith.constant 0 : i32
    %c0_i32_1 = arith.constant 0 : i32
    return %c0_i32, %c0_i32_0 : i32, i32
  }
  func.func @transform_15(%arg0: i32) -> (i32, i32) {
    %c0_i32 = arith.constant 0 : i32
    %c0_i32_0 = arith.constant 0 : i32
    %c0_i32_1 = arith.constant 0 : i32
    return %c0_i32, %c0_i32_0 : i32, i32
  }
  func.func @transform_16(%arg0: i32) -> (i32, i32) {
    %c0_i32 = arith.constant 0 : i32
    %c0_i32_0 = arith.constant 0 : i32
    %c0_i32_1 = arith.constant 0 : i32
    return %c0_i32, %c0_i32_0 : i32, i32
  }
  func.func @transform_17(%arg0: i32) -> (i32, i32) {
    %c0_i32 = arith.constant 0 : i32
    %c0_i32_0 = arith.constant 0 : i32
    return %c0_i32, %arg0 : i32, i32
  }
}

</mosaic_0001>

<llo_original>
// kernel: temporal_conv_net.1
$region0: #{temporal_conv_net.1}
  #allocation0 [shape = 'u32[]', space=smem, size = 0x4, offset = 0x4, fixed_abs, tag = 'smem constant byte address 0x4 - core index']
  #allocation1 [shape = 'u32[144,128]{1,0:T(1,128)}', space=vmem, size = 0x12000, scoped, tag = 'internal scratch']
  %s0 = inlined_call_operand.vmem [shape: bf16[8,512], index: 0, kind: input, shape index: {}]
  %s1 = inlined_call_operand.hbm [shape: bf16[8,24], index: 1, kind: input, shape index: {}]
  %s2 = inlined_call_operand.hbm [shape: f32[8,1], index: 2, kind: input, shape index: {}]
  %s3 = inlined_call_operand.hbm [shape: bf16[8,24], index: 3, kind: input, shape index: {}]
  %s4 = inlined_call_operand.hbm [shape: f32[8,1], index: 4, kind: input, shape index: {}]
  %s5 = inlined_call_operand.hbm [shape: bf16[8,8], index: 5, kind: input, shape index: {}]
  %s6 = inlined_call_operand.hbm [shape: f32[8,1], index: 6, kind: input, shape index: {}]
  %s7 = inlined_call_operand.hbm [shape: bf16[16,24], index: 7, kind: input, shape index: {}]
  %s8 = inlined_call_operand.hbm [shape: f32[16,1], index: 8, kind: input, shape index: {}]
  %s9 = inlined_call_operand.vmem [shape: bf16[16,48], index: 9, kind: input, shape index: {}]
  %s10 = inlined_call_operand.vmem [shape: f32[16,1], index: 10, kind: input, shape index: {}]
  %s11 = inlined_call_operand.vmem [shape: bf16[16,8], index: 11, kind: input, shape index: {}]
  %s12 = inlined_call_operand.vmem [shape: f32[16,1], index: 12, kind: input, shape index: {}]
  %s13 = inlined_call_operand.vmem [shape: bf16[16,48], index: 13, kind: input, shape index: {}]
  %s14 = inlined_call_operand.vmem [shape: f32[16,1], index: 14, kind: input, shape index: {}]
  %s15 = inlined_call_operand.vmem [shape: bf16[16,48], index: 15, kind: input, shape index: {}]
  %s16 = inlined_call_operand.vmem [shape: f32[16,1], index: 16, kind: input, shape index: {}]
  %s17 = inlined_call_operand.vmem [shape: f32[16,512], index: 17, kind: output, shape index: {}]
  %s18 = sld [smem:[#allocation0]]
  $region152: #{temporal_conv_net.1} parent=0
    _
  %s20 = ssub.s32 1, %s18
  %s21 = scalar_select 0, %s20, %s18
  $region1: #{temporal_conv_net.1} parent=0
    #allocation2 [shape = 'u8[2048]{0}', space=vmem, size = 0x800, scoped, tag = 'input window, operand 1, single buffered']
    #allocation3 [shape = 's32[2]{0}', space=sflag, size = 0x8, scoped, tag = 'scoped memory for temporal_conv_net.1']
    #allocation4 [shape = 'u8[4096]{0}', space=vmem, size = 0x1000, scoped, tag = 'input window, operand 2, single buffered']
    #allocation5 [shape = 's32[1]{0}', space=sflag, size = 0x4, scoped, tag = 'scoped memory for temporal_conv_net.1']
    #allocation6 [shape = 'u8[2048]{0}', space=vmem, size = 0x800, scoped, tag = 'input window, operand 3, single buffered']
    #allocation7 [shape = 'u8[4096]{0}', space=vmem, size = 0x1000, scoped, tag = 'input window, operand 4, single buffered']
    #allocation8 [shape = 's32[1]{0}', space=sflag, size = 0x4, scoped, tag = 'scoped memory for temporal_conv_net.1']
    #allocation9 [shape = 'u8[2048]{0}', space=vmem, size = 0x800, scoped, tag = 'input window, operand 5, single buffered']
    #allocation10 [shape = 'u8[4096]{0}', space=vmem, size = 0x1000, scoped, tag = 'input window, operand 6, single buffered']
    #allocation11 [shape = 's32[1]{0}', space=sflag, size = 0x4, scoped, tag = 'scoped memory for temporal_conv_net.1']
    #allocation12 [shape = 'u8[4096]{0}', space=vmem, size = 0x1000, scoped, tag = 'input window, operand 7, single buffered']
    #allocation13 [shape = 'u8[8192]{0}', space=vmem, size = 0x2000, scoped, tag = 'input window, operand 8, single buffered']
    #allocation14 [shape = 's32[1]{0}', space=sflag, size = 0x4, scoped, tag = 'scoped memory for temporal_conv_net.1']
    #allocation15 [shape = 'u8[32768]{0}', space=vmem, size = 0x8000, scoped, tag = 'output window, operand 0']
    %22 = vsyncpa [#allocation3], 0
    %23 = vsyncpa [#allocation5], 0
    %24 = vsyncpa [#allocation8], 0
    %25 = vsyncpa [#allocation11], 0
    %26 = vsyncpa [#allocation14], 0
    loop: start=0, step=1, limit=4
    $region2: #{temporal_conv_net.1} parent=1 // loop_pre_header
      _
    $region3: #{temporal_conv_net.1} parent=1 // loop_header
      %s28 = sphi 0, %s32
      %p29 = scmp.ge.s32.totalorder %s28, 4
      %s38 = sphi 0, %s40
      %s41 = sphi 0, %s38
      %s42 = sphi 0, %s41
      %s58 = sphi 0, %s42
      %s62 = sphi 0, %s62
      %s64 = sphi 0, %s62
      %s65 = sphi 0, %s64
      %s79 = sphi 0, %s65
      %s83 = sphi 0, %s83
      %s85 = sphi 0, %s83
      %s86 = sphi 0, %s85
      %s100 = sphi 0, %s86
      %s104 = sphi 0, %s104
      %s106 = sphi 0, %s104
      %s107 = sphi 0, %s106
      %s121 = sphi 0, %s107
      %s125 = sphi 0, %s125
      %s127 = sphi 0, %s125
      %s128 = sphi 0, %s127
      %s142 = sphi 0, %s128
      %s146 = sphi 0, %s146
      %s148 = sphi 0, %s146
      %s149 = sphi 0, %s148
      %s163 = sphi 0, %s149
      %s167 = sphi 0, %s167
      %s169 = sphi 0, %s167
      %s170 = sphi 0, %s169
      %s184 = sphi 0, %s170
      %s188 = sphi 0, %s188
      %s190 = sphi 0, %s188
      %s191 = sphi 0, %s190
      %s205 = sphi 0, %s191
      %s209 = sphi 0, %s209
      %s211 = sphi 0, %s209
      %s212 = sphi 0, %s211
      %s226 = sphi 0, %s212
      %s230 = sphi 0, %s230
      %s232 = sphi 0, %s230
      %s233 = sphi 0, %s232
      %s247 = sphi 0, %s233
      %s251 = sphi 0, %s251
      %s253 = sphi 0, %s251
      %s254 = sphi 0, %s253
      %s268 = sphi 0, %s254
      %s272 = sphi 0, %s272
      %s274 = sphi 0, %s272
      %s275 = sphi 0, %s274
      %s289 = sphi 0, %s275
      %s293 = sphi 0, %s293
      %s295 = sphi 0, %s293
      %s296 = sphi 0, %s295
      %s310 = sphi 0, %s296
      %s314 = sphi 0, %s314
      %s316 = sphi 0, %s314
      %s317 = sphi 0, %s316
      %s331 = sphi 0, %s317
      %s335 = sphi 0, %s335
      %s337 = sphi 0, %s335
      %s338 = sphi 0, %s337
      %s352 = sphi 0, %s338
      %s356 = sphi 0, %s356
      %s358 = sphi 0, %s356
      %s359 = sphi 0, %s358
      %s373 = sphi 0, %s359
      %s377 = sphi 0, %s377
      %s379 = sphi 0, %s377
      %s380 = sphi 0, %s379
      %s394 = sphi 0, %s380
      %s400 = sphi 0, %s402
      %s403 = sphi 0, %s400
      %s404 = sphi 0, %s403
      %s420 = sphi 0, %s404
    $region4: #{temporal_conv_net.1} parent=1 // loop_header_branch
      %31 = sbr.rel (%p29) target = $region8
    $region5: #{temporal_conv_net.1} parent=1 // loop_body
      %s33 = ssub.s32 %s28, 1
      %s34 = ssub.s32 %s28, 2
      %s35 = sadd.s32 %s28, 1
      %s36 = ssub.s32 %s28, %s35
      %p37 = scmp.eq.s32.totalorder %s36, 0
      %s39 = sadd.s32 %s38, 1
      %s40 = scalar_select %p37, %s38, %s39
      %p43 = pneg %p37
      %p44 = scmp.eq.s32.totalorder %s28, 1
      %p45 = por %p43, %p44
      %p46 = scmp.ne.s32.totalorder %s38, %s41
      %p47 = scmp.eq.s32.totalorder %s28, 0
      %p48 = por %p46, %p47
      %p49 = scmp.ne.s32.totalorder %s38, %s41
      %p50 = scmp.eq.s32.totalorder %s33, 1
      %p51 = por %p49, %p50
      %p52 = scmp.ne.s32.totalorder %s41, %s42
      %p53 = scmp.eq.s32.totalorder %s33, 0
      %p54 = por %p52, %p53
      %p55 = scmp.ne.s32.totalorder %s41, %s42
      %p56 = scmp.eq.s32.totalorder %s34, 1
      %p57 = por %p55, %p56
      %p59 = scmp.ne.s32.totalorder %s42, %s58
      %p60 = scmp.eq.s32.totalorder %s34, 0
      %p61 = por %p59, %p60
      %s63 = sadd.s32 %s62, 1
      %p66 = scmp.eq.s32.totalorder %s28, 1
      %p67 = scmp.ne.s32.totalorder %s62, %s64
      %p68 = scmp.eq.s32.totalorder %s28, 0
      %p69 = por %p67, %p68
      %p70 = scmp.ne.s32.totalorder %s62, %s64
      %p71 = scmp.eq.s32.totalorder %s33, 1
      %p72 = por %p70, %p71
      %p73 = scmp.ne.s32.totalorder %s64, %s65
      %p74 = scmp.eq.s32.totalorder %s33, 0
      %p75 = por %p73, %p74
      %p76 = scmp.ne.s32.totalorder %s64, %s65
      %p77 = scmp.eq.s32.totalorder %s34, 1
      %p78 = por %p76, %p77
      %p80 = scmp.ne.s32.totalorder %s65, %s79
      %p81 = scmp.eq.s32.totalorder %s34, 0
      %p82 = por %p80, %p81
      %s84 = sadd.s32 %s83, 1
      %p87 = scmp.eq.s32.totalorder %s28, 1
      %p88 = scmp.ne.s32.totalorder %s83, %s85
      %p89 = scmp.eq.s32.totalorder %s28, 0
      %p90 = por %p88, %p89
      %p91 = scmp.ne.s32.totalorder %s83, %s85
      %p92 = scmp.eq.s32.totalorder %s33, 1
      %p93 = por %p91, %p92
      %p94 = scmp.ne.s32.totalorder %s85, %s86
      %p95 = scmp.eq.s32.totalorder %s33, 0
      %p96 = por %p94, %p95
      %p97 = scmp.ne.s32.totalorder %s85, %s86
      %p98 = scmp.eq.s32.totalorder %s34, 1
      %p99 = por %p97, %p98
      %p101 = scmp.ne.s32.totalorder %s86, %s100
      %p102 = scmp.eq.s32.totalorder %s34, 0
      %p103 = por %p101, %p102
      %s105 = sadd.s32 %s104, 1
      %p108 = scmp.eq.s32.totalorder %s28, 1
      %p109 = scmp.ne.s32.totalorder %s104, %s106
      %p110 = scmp.eq.s32.totalorder %s28, 0
      %p111 = por %p109, %p110
      %p112 = scmp.ne.s32.totalorder %s104, %s106
      %p113 = scmp.eq.s32.totalorder %s33, 1
      %p114 = por %p112, %p113
      %p115 = scmp.ne.s32.totalorder %s106, %s107
      %p116 = scmp.eq.s32.totalorder %s33, 0
      %p117 = por %p115, %p116
      %p118 = scmp.ne.s32.totalorder %s106, %s107
      %p119 = scmp.eq.s32.totalorder %s34, 1
      %p120 = por %p118, %p119
      %p122 = scmp.ne.s32.totalorder %s107, %s121
      %p123 = scmp.eq.s32.totalorder %s34, 0
      %p124 = por %p122, %p123
      %s126 = sadd.s32 %s125, 1
      %p129 = scmp.eq.s32.totalorder %s28, 1
      %p130 = scmp.ne.s32.totalorder %s125, %s127
      %p131 = scmp.eq.s32.totalorder %s28, 0
      %p132 = por %p130, %p131
      %p133 = scmp.ne.s32.totalorder %s125, %s127
      %p134 = scmp.eq.s32.totalorder %s33, 1
      %p135 = por %p133, %p134
      %p136 = scmp.ne.s32.totalorder %s127, %s128
      %p137 = scmp.eq.s32.totalorder %s33, 0
      %p138 = por %p136, %p137
      %p139 = scmp.ne.s32.totalorder %s127, %s128
      %p140 = scmp.eq.s32.totalorder %s34, 1
      %p141 = por %p139, %p140
      %p143 = scmp.ne.s32.totalorder %s128, %s142
      %p144 = scmp.eq.s32.totalorder %s34, 0
      %p145 = por %p143, %p144
      %s147 = sadd.s32 %s146, 1
      %p150 = scmp.eq.s32.totalorder %s28, 1
      %p151 = scmp.ne.s32.totalorder %s146, %s148
      %p152 = scmp.eq.s32.totalorder %s28, 0
      %p153 = por %p151, %p152
      %p154 = scmp.ne.s32.totalorder %s146, %s148
      %p155 = scmp.eq.s32.totalorder %s33, 1
      %p156 = por %p154, %p155
      %p157 = scmp.ne.s32.totalorder %s148, %s149
      %p158 = scmp.eq.s32.totalorder %s33, 0
      %p159 = por %p157, %p158
      %p160 = scmp.ne.s32.totalorder %s148, %s149
      %p161 = scmp.eq.s32.totalorder %s34, 1
      %p162 = por %p160, %p161
      %p164 = scmp.ne.s32.totalorder %s149, %s163
      %p165 = scmp.eq.s32.totalorder %s34, 0
      %p166 = por %p164, %p165
      %s168 = sadd.s32 %s167, 1
      %p171 = scmp.eq.s32.totalorder %s28, 1
      %p172 = scmp.ne.s32.totalorder %s167, %s169
      %p173 = scmp.eq.s32.totalorder %s28, 0
      %p174 = por %p172, %p173
      %p175 = scmp.ne.s32.totalorder %s167, %s169
      %p176 = scmp.eq.s32.totalorder %s33, 1
      %p177 = por %p175, %p176
      %p178 = scmp.ne.s32.totalorder %s169, %s170
      %p179 = scmp.eq.s32.totalorder %s33, 0
      %p180 = por %p178, %p179
      %p181 = scmp.ne.s32.totalorder %s169, %s170
      %p182 = scmp.eq.s32.totalorder %s34, 1
      %p183 = por %p181, %p182
      %p185 = scmp.ne.s32.totalorder %s170, %s184
      %p186 = scmp.eq.s32.totalorder %s34, 0
      %p187 = por %p185, %p186
      %s189 = sadd.s32 %s188, 1
      %p192 = scmp.eq.s32.totalorder %s28, 1
      %p193 = scmp.ne.s32.totalorder %s188, %s190
      %p194 = scmp.eq.s32.totalorder %s28, 0
      %p195 = por %p193, %p194
      %p196 = scmp.ne.s32.totalorder %s188, %s190
      %p197 = scmp.eq.s32.totalorder %s33, 1
      %p198 = por %p196, %p197
      %p199 = scmp.ne.s32.totalorder %s190, %s191
      %p200 = scmp.eq.s32.totalorder %s33, 0
      %p201 = por %p199, %p200
      %p202 = scmp.ne.s32.totalorder %s190, %s191
      %p203 = scmp.eq.s32.totalorder %s34, 1
      %p204 = por %p202, %p203
      %p206 = scmp.ne.s32.totalorder %s191, %s205
      %p207 = scmp.eq.s32.totalorder %s34, 0
      %p208 = por %p206, %p207
      %s210 = sadd.s32 %s209, 1
      %p213 = scmp.eq.s32.totalorder %s28, 1
      %p214 = scmp.ne.s32.totalorder %s209, %s211
      %p215 = scmp.eq.s32.totalorder %s28, 0
      %p216 = por %p214, %p215
      %p217 = scmp.ne.s32.totalorder %s209, %s211
      %p218 = scmp.eq.s32.totalorder %s33, 1
      %p219 = por %p217, %p218
      %p220 = scmp.ne.s32.totalorder %s211, %s212
      %p221 = scmp.eq.s32.totalorder %s33, 0
      %p222 = por %p220, %p221
      %p223 = scmp.ne.s32.totalorder %s211, %s212
      %p224 = scmp.eq.s32.totalorder %s34, 1
      %p225 = por %p223, %p224
      %p227 = scmp.ne.s32.totalorder %s212, %s226
      %p228 = scmp.eq.s32.totalorder %s34, 0
      %p229 = por %p227, %p228
      %s231 = sadd.s32 %s230, 1
      %p234 = scmp.eq.s32.totalorder %s28, 1
      %p235 = scmp.ne.s32.totalorder %s230, %s232
      %p236 = scmp.eq.s32.totalorder %s28, 0
      %p237 = por %p235, %p236
      %p238 = scmp.ne.s32.totalorder %s230, %s232
      %p239 = scmp.eq.s32.totalorder %s33, 1
      %p240 = por %p238, %p239
      %p241 = scmp.ne.s32.totalorder %s232, %s233
      %p242 = scmp.eq.s32.totalorder %s33, 0
      %p243 = por %p241, %p242
      %p244 = scmp.ne.s32.totalorder %s232, %s233
      %p245 = scmp.eq.s32.totalorder %s34, 1
      %p246 = por %p244, %p245
      %p248 = scmp.ne.s32.totalorder %s233, %s247
      %p249 = scmp.eq.s32.totalorder %s34, 0
      %p250 = por %p248, %p249
      %s252 = sadd.s32 %s251, 1
      %p255 = scmp.eq.s32.totalorder %s28, 1
      %p256 = scmp.ne.s32.totalorder %s251, %s253
      %p257 = scmp.eq.s32.totalorder %s28, 0
      %p258 = por %p256, %p257
      %p259 = scmp.ne.s32.totalorder %s251, %s253
      %p260 = scmp.eq.s32.totalorder %s33, 1
      %p261 = por %p259, %p260
      %p262 = scmp.ne.s32.totalorder %s253, %s254
      %p263 = scmp.eq.s32.totalorder %s33, 0
      %p264 = por %p262, %p263
      %p265 = scmp.ne.s32.totalorder %s253, %s254
      %p266 = scmp.eq.s32.totalorder %s34, 1
      %p267 = por %p265, %p266
      %p269 = scmp.ne.s32.totalorder %s254, %s268
      %p270 = scmp.eq.s32.totalorder %s34, 0
      %p271 = por %p269, %p270
      %s273 = sadd.s32 %s272, 1
      %p276 = scmp.eq.s32.totalorder %s28, 1
      %p277 = scmp.ne.s32.totalorder %s272, %s274
      %p278 = scmp.eq.s32.totalorder %s28, 0
      %p279 = por %p277, %p278
      %p280 = scmp.ne.s32.totalorder %s272, %s274
      %p281 = scmp.eq.s32.totalorder %s33, 1
      %p282 = por %p280, %p281
      %p283 = scmp.ne.s32.totalorder %s274, %s275
      %p284 = scmp.eq.s32.totalorder %s33, 0
      %p285 = por %p283, %p284
      %p286 = scmp.ne.s32.totalorder %s274, %s275
      %p287 = scmp.eq.s32.totalorder %s34, 1
      %p288 = por %p286, %p287
      %p290 = scmp.ne.s32.totalorder %s275, %s289
      %p291 = scmp.eq.s32.totalorder %s34, 0
      %p292 = por %p290, %p291
      %s294 = sadd.s32 %s293, 1
      %p297 = scmp.eq.s32.totalorder %s28, 1
      %p298 = scmp.ne.s32.totalorder %s293, %s295
      %p299 = scmp.eq.s32.totalorder %s28, 0
      %p300 = por %p298, %p299
      %p301 = scmp.ne.s32.totalorder %s293, %s295
      %p302 = scmp.eq.s32.totalorder %s33, 1
      %p303 = por %p301, %p302
      %p304 = scmp.ne.s32.totalorder %s295, %s296
      %p305 = scmp.eq.s32.totalorder %s33, 0
      %p306 = por %p304, %p305
      %p307 = scmp.ne.s32.totalorder %s295, %s296
      %p308 = scmp.eq.s32.totalorder %s34, 1
      %p309 = por %p307, %p308
      %p311 = scmp.ne.s32.totalorder %s296, %s310
      %p312 = scmp.eq.s32.totalorder %s34, 0
      %p313 = por %p311, %p312
      %s315 = sadd.s32 %s314, 1
      %p318 = scmp.eq.s32.totalorder %s28, 1
      %p319 = scmp.ne.s32.totalorder %s314, %s316
      %p320 = scmp.eq.s32.totalorder %s28, 0
      %p321 = por %p319, %p320
      %p322 = scmp.ne.s32.totalorder %s314, %s316
      %p323 = scmp.eq.s32.totalorder %s33, 1
      %p324 = por %p322, %p323
      %p325 = scmp.ne.s32.totalorder %s316, %s317
      %p326 = scmp.eq.s32.totalorder %s33, 0
      %p327 = por %p325, %p326
      %p328 = scmp.ne.s32.totalorder %s316, %s317
      %p329 = scmp.eq.s32.totalorder %s34, 1
      %p330 = por %p328, %p329
      %p332 = scmp.ne.s32.totalorder %s317, %s331
      %p333 = scmp.eq.s32.totalorder %s34, 0
      %p334 = por %p332, %p333
      %s336 = sadd.s32 %s335, 1
      %p339 = scmp.eq.s32.totalorder %s28, 1
      %p340 = scmp.ne.s32.totalorder %s335, %s337
      %p341 = scmp.eq.s32.totalorder %s28, 0
      %p342 = por %p340, %p341
      %p343 = scmp.ne.s32.totalorder %s335, %s337
      %p344 = scmp.eq.s32.totalorder %s33, 1
      %p345 = por %p343, %p344
      %p346 = scmp.ne.s32.totalorder %s337, %s338
      %p347 = scmp.eq.s32.totalorder %s33, 0
      %p348 = por %p346, %p347
      %p349 = scmp.ne.s32.totalorder %s337, %s338
      %p350 = scmp.eq.s32.totalorder %s34, 1
      %p351 = por %p349, %p350
      %p353 = scmp.ne.s32.totalorder %s338, %s352
      %p354 = scmp.eq.s32.totalorder %s34, 0
      %p355 = por %p353, %p354
      %s357 = sadd.s32 %s356, 1
      %p360 = scmp.eq.s32.totalorder %s28, 1
      %p361 = scmp.ne.s32.totalorder %s356, %s358
      %p362 = scmp.eq.s32.totalorder %s28, 0
      %p363 = por %p361, %p362
      %p364 = scmp.ne.s32.totalorder %s356, %s358
      %p365 = scmp.eq.s32.totalorder %s33, 1
      %p366 = por %p364, %p365
      %p367 = scmp.ne.s32.totalorder %s358, %s359
      %p368 = scmp.eq.s32.totalorder %s33, 0
      %p369 = por %p367, %p368
      %p370 = scmp.ne.s32.totalorder %s358, %s359
      %p371 = scmp.eq.s32.totalorder %s34, 1
      %p372 = por %p370, %p371
      %p374 = scmp.ne.s32.totalorder %s359, %s373
      %p375 = scmp.eq.s32.totalorder %s34, 0
      %p376 = por %p374, %p375
      %s378 = sadd.s32 %s377, 1
      %p381 = scmp.eq.s32.totalorder %s28, 1
      %p382 = scmp.ne.s32.totalorder %s377, %s379
      %p383 = scmp.eq.s32.totalorder %s28, 0
      %p384 = por %p382, %p383
      %p385 = scmp.ne.s32.totalorder %s377, %s379
      %p386 = scmp.eq.s32.totalorder %s33, 1
      %p387 = por %p385, %p386
      %p388 = scmp.ne.s32.totalorder %s379, %s380
      %p389 = scmp.eq.s32.totalorder %s33, 0
      %p390 = por %p388, %p389
      %p391 = scmp.ne.s32.totalorder %s379, %s380
      %p392 = scmp.eq.s32.totalorder %s34, 1
      %p393 = por %p391, %p392
      %p395 = scmp.ne.s32.totalorder %s380, %s394
      %p396 = scmp.eq.s32.totalorder %s34, 0
      %p397 = por %p395, %p396
      %s398 = ssub.s32 %s28, %s35
      %p399 = scmp.eq.s32.totalorder %s398, 0
      %s401 = sadd.s32 %s400, 1
      %s402 = scalar_select %p399, %s400, %s401
      %p405 = pneg %p399
      %p406 = scmp.eq.s32.totalorder %s28, 1
      %p407 = por %p405, %p406
      %p408 = scmp.ne.s32.totalorder %s400, %s403
      %p409 = scmp.eq.s32.totalorder %s28, 0
      %p410 = por %p408, %p409
      %p411 = scmp.ne.s32.totalorder %s400, %s403
      %p412 = scmp.eq.s32.totalorder %s33, 1
      %p413 = por %p411, %p412
      %p414 = scmp.ne.s32.totalorder %s403, %s404
      %p415 = scmp.eq.s32.totalorder %s33, 0
      %p416 = por %p414, %p415
      %p417 = scmp.ne.s32.totalorder %s403, %s404
      %p418 = scmp.eq.s32.totalorder %s34, 1
      %p419 = por %p417, %p418
      %p421 = scmp.ne.s32.totalorder %s404, %s420
      %p422 = scmp.eq.s32.totalorder %s34, 0
      %p423 = por %p421, %p422
      %p424 = scmp.le.s32.totalorder 1, %s28
      %p425 = scmp.lt.s32.totalorder %s28, 3
      %p426 = pnand %p424, %p425
      %p427 = pneg %p426
      // Predicated region
      $region9: #{temporal_conv_net.1} parent=5 // pred_check
        _
      $region10: #{temporal_conv_net.1} parent=5 // pred_check_branch
        %429 = sbr.rel (%p426) target = $region12
      $region11: #{temporal_conv_net.1} parent=5 // pred_region
        %s430 = ssub.s32 %s28, 1
        // Predicated region
        $region13: #{temporal_conv_net.1} parent=11 // pred_check
          %p431 = pneg %p75
        $region14: #{temporal_conv_net.1} parent=11 // pred_check_branch
          %433 = sbr.rel (%p431) target = $region16
        $region15: #{temporal_conv_net.1} parent=11 // pred_region
          %s435 = ssub.s32 64, 64
          %436 = vsyncadd [#allocation3], %s435
          %s438 = sshll.u32 [#allocation2], 4
          %s439 = int_to_ptr.vmem [resolvable:$true] %s438
          %441 = dma.hbm_to_vmem [thread:$0]  %s1, 64, %s439, [#allocation3]
        $region16: #{temporal_conv_net.1} parent=11 // pred_fallthru
          _
        // Predicated region
        $region17: #{temporal_conv_net.1} parent=11 // pred_check
          %p442 = pneg %p96
        $region18: #{temporal_conv_net.1} parent=11 // pred_check_branch
          %444 = sbr.rel (%p442) target = $region20
        $region19: #{temporal_conv_net.1} parent=11 // pred_region
          %s446 = ssub.s32 128, 128
          %447 = vsyncadd [#allocation5], %s446
          %s449 = sshll.u32 [#allocation4], 4
          %s450 = int_to_ptr.vmem [resolvable:$true] %s449
          %452 = dma.hbm_to_vmem [thread:$0]  %s2, 128, %s450, [#allocation5]
        $region20: #{temporal_conv_net.1} parent=11 // pred_fallthru
          _
        // Predicated region
        $region21: #{temporal_conv_net.1} parent=11 // pred_check
          %p453 = pneg %p117
        $region22: #{temporal_conv_net.1} parent=11 // pred_check_branch
          %455 = sbr.rel (%p453) target = $region24
        $region23: #{temporal_conv_net.1} parent=11 // pred_region
          %s457 = ssub.s32 64, 64
          %458 = vsyncadd [#allocation5], %s457
          %s460 = sshll.u32 [#allocation6], 4
          %s461 = int_to_ptr.vmem [resolvable:$true] %s460
          %463 = dma.hbm_to_vmem [thread:$0]  %s3, 64, %s461, [#allocation5]
        $region24: #{temporal_conv_net.1} parent=11 // pred_fallthru
          _
        // Predicated region
        $region25: #{temporal_conv_net.1} parent=11 // pred_check
          %p464 = pneg %p138
        $region26: #{temporal_conv_net.1} parent=11 // pred_check_branch
          %466 = sbr.rel (%p464) target = $region28
        $region27: #{temporal_conv_net.1} parent=11 // pred_region
          %s468 = ssub.s32 128, 128
          %469 = vsyncadd [#allocation8], %s468
          %s471 = sshll.u32 [#allocation7], 4
          %s472 = int_to_ptr.vmem [resolvable:$true] %s471
          %474 = dma.hbm_to_vmem [thread:$0]  %s4, 128, %s472, [#allocation8]
        $region28: #{temporal_conv_net.1} parent=11 // pred_fallthru
          _
        // Predicated region
        $region29: #{temporal_conv_net.1} parent=11 // pred_check
          %p475 = pneg %p159
        $region30: #{temporal_conv_net.1} parent=11 // pred_check_branch
          %477 = sbr.rel (%p475) target = $region32
        $region31: #{temporal_conv_net.1} parent=11 // pred_region
          %s479 = ssub.s32 64, 64
          %480 = vsyncadd [#allocation8], %s479
          %s482 = sshll.u32 [#allocation9], 4
          %s483 = int_to_ptr.vmem [resolvable:$true] %s482
          %485 = dma.hbm_to_vmem [thread:$0]  %s5, 64, %s483, [#allocation8]
        $region32: #{temporal_conv_net.1} parent=11 // pred_fallthru
          _
        // Predicated region
        $region33: #{temporal_conv_net.1} parent=11 // pred_check
          %p486 = pneg %p180
        $region34: #{temporal_conv_net.1} parent=11 // pred_check_branch
          %488 = sbr.rel (%p486) target = $region36
        $region35: #{temporal_conv_net.1} parent=11 // pred_region
          %s490 = ssub.s32 128, 128
          %491 = vsyncadd [#allocation11], %s490
          %s493 = sshll.u32 [#allocation10], 4
          %s494 = int_to_ptr.vmem [resolvable:$true] %s493
          %496 = dma.hbm_to_vmem [thread:$0]  %s6, 128, %s494, [#allocation11]
        $region36: #{temporal_conv_net.1} parent=11 // pred_fallthru
          _
        // Predicated region
        $region37: #{temporal_conv_net.1} parent=11 // pred_check
          %p497 = pneg %p201
        $region38: #{temporal_conv_net.1} parent=11 // pred_check_branch
          %499 = sbr.rel (%p497) target = $region40
        $region39: #{temporal_conv_net.1} parent=11 // pred_region
          %s501 = ssub.s32 128, 128
          %502 = vsyncadd [#allocation11], %s501
          %s503 = sshll.u32 [#allocation12], 4
          %s504 = int_to_ptr.vmem [resolvable:$true] %s503
          %509 = dma.hbm_to_vmem [thread:$0]  %s7, 128, %s504, [#allocation11], 64, 64, 4
        $region40: #{temporal_conv_net.1} parent=11 // pred_fallthru
          _
        // Predicated region
        $region41: #{temporal_conv_net.1} parent=11 // pred_check
          %p510 = pneg %p222
        $region42: #{temporal_conv_net.1} parent=11 // pred_check_branch
          %512 = sbr.rel (%p510) target = $region44
        $region43: #{temporal_conv_net.1} parent=11 // pred_region
          %s514 = ssub.s32 256, 256
          %515 = vsyncadd [#allocation14], %s514
          %s516 = sshll.u32 [#allocation13], 4
          %s517 = int_to_ptr.vmem [resolvable:$true] %s516
          %522 = dma.hbm_to_vmem [thread:$0]  %s8, 256, %s517, [#allocation14], 128, 128, 8
        $region44: #{temporal_conv_net.1} parent=11 // pred_fallthru
          _
        // Predicated region
        $region45: #{temporal_conv_net.1} parent=11 // pred_check
          %p523 = pneg %p243
        $region46: #{temporal_conv_net.1} parent=11 // pred_check_branch
          %525 = sbr.rel (%p523) target = $region48
        $region47: #{temporal_conv_net.1} parent=11 // pred_region
          _
        $region48: #{temporal_conv_net.1} parent=11 // pred_fallthru
          _
        // Predicated region
        $region49: #{temporal_conv_net.1} parent=11 // pred_check
          %p526 = pneg %p264
        $region50: #{temporal_conv_net.1} parent=11 // pred_check_branch
          %528 = sbr.rel (%p526) target = $region52
        $region51: #{temporal_conv_net.1} parent=11 // pred_region
          _
        $region52: #{temporal_conv_net.1} parent=11 // pred_fallthru
          _
        // Predicated region
        $region53: #{temporal_conv_net.1} parent=11 // pred_check
          %p529 = pneg %p285
        $region54: #{temporal_conv_net.1} parent=11 // pred_check_branch
          %531 = sbr.rel (%p529) target = $region56
        $region55: #{temporal_conv_net.1} parent=11 // pred_region
          _
        $region56: #{temporal_conv_net.1} parent=11 // pred_fallthru
          _
        // Predicated region
        $region57: #{temporal_conv_net.1} parent=11 // pred_check
          %p532 = pneg %p306
        $region58: #{temporal_conv_net.1} parent=11 // pred_check_branch
          %534 = sbr.rel (%p532) target = $region60
        $region59: #{temporal_conv_net.1} parent=11 // pred_region
          _
        $region60: #{temporal_conv_net.1} parent=11 // pred_fallthru
          _
        // Predicated region
        $region61: #{temporal_conv_net.1} parent=11 // pred_check
          %p535 = pneg %p327
        $region62: #{temporal_conv_net.1} parent=11 // pred_check_branch
          %537 = sbr.rel (%p535) target = $region64
        $region63: #{temporal_conv_net.1} parent=11 // pred_region
          _
        $region64: #{temporal_conv_net.1} parent=11 // pred_fallthru
          _
        // Predicated region
        $region65: #{temporal_conv_net.1} parent=11 // pred_check
          %p538 = pneg %p348
        $region66: #{temporal_conv_net.1} parent=11 // pred_check_branch
          %540 = sbr.rel (%p538) target = $region68
        $region67: #{temporal_conv_net.1} parent=11 // pred_region
          _
        $region68: #{temporal_conv_net.1} parent=11 // pred_fallthru
          _
        // Predicated region
        $region69: #{temporal_conv_net.1} parent=11 // pred_check
          %p541 = pneg %p369
        $region70: #{temporal_conv_net.1} parent=11 // pred_check_branch
          %543 = sbr.rel (%p541) target = $region72
        $region71: #{temporal_conv_net.1} parent=11 // pred_region
          _
        $region72: #{temporal_conv_net.1} parent=11 // pred_fallthru
          _
        // Predicated region
        $region73: #{temporal_conv_net.1} parent=11 // pred_check
          %p544 = pneg %p390
        $region74: #{temporal_conv_net.1} parent=11 // pred_check_branch
          %546 = sbr.rel (%p544) target = $region76
        $region75: #{temporal_conv_net.1} parent=11 // pred_region
          _
        $region76: #{temporal_conv_net.1} parent=11 // pred_fallthru
          _
      $region12: #{temporal_conv_net.1} parent=5 // pred_fallthru
        _
      %p547 = scmp.lt.s32.totalorder %s28, 2
      // Predicated region
      $region77: #{temporal_conv_net.1} parent=5 // pred_check
        %p548 = pneg %p547
      $region78: #{temporal_conv_net.1} parent=5 // pred_check_branch
        %550 = sbr.rel (%p548) target = $region80
      $region79: #{temporal_conv_net.1} parent=5 // pred_region
        // Predicated region
        $region81: #{temporal_conv_net.1} parent=79 // pred_check
          %p551 = pneg %p48
        $region82: #{temporal_conv_net.1} parent=79 // pred_check_branch
          %553 = sbr.rel (%p551) target = $region84
        $region83: #{temporal_conv_net.1} parent=79 // pred_region
          %s554 = smul.u32 2, %s28
          %p555 = scmp.lt.s32.totalorder %s554, 3
          %s556 = scalar_select %p555, %s554, 3
          %s557 = smul.addr %s556, 4
          %s558 = scalar_lea.vmem %s0, %s557
          %s559 = smul.u32 2, %s28
        $region84: #{temporal_conv_net.1} parent=79 // pred_fallthru
          _
      $region80: #{temporal_conv_net.1} parent=5 // pred_fallthru
        _
      %p560 = scmp.le.s32.totalorder 1, %s28
      %p561 = scmp.lt.s32.totalorder %s28, 3
      %p562 = pnand %p560, %p561
      %p563 = pneg %p562
      // Predicated region
      $region85: #{temporal_conv_net.1} parent=5 // pred_check
        _
      $region86: #{temporal_conv_net.1} parent=5 // pred_check_branch
        %565 = sbr.rel (%p562) target = $region88
      $region87: #{temporal_conv_net.1} parent=5 // pred_region
        %s566 = ssub.s32 %s28, 1
        // Predicated region
        $region89: #{temporal_conv_net.1} parent=87 // pred_check
          %p567 = pneg %p75
        $region90: #{temporal_conv_net.1} parent=87 // pred_check_branch
          %569 = sbr.rel (%p567) target = $region92
        $region91: #{temporal_conv_net.1} parent=87 // pred_region
          %570 = dma.done [#allocation3], 64
        $region92: #{temporal_conv_net.1} parent=87 // pred_fallthru
          _
        // Predicated region
        $region93: #{temporal_conv_net.1} parent=87 // pred_check
          %p571 = pneg %p96
        $region94: #{temporal_conv_net.1} parent=87 // pred_check_branch
          %573 = sbr.rel (%p571) target = $region96
        $region95: #{temporal_conv_net.1} parent=87 // pred_region
          %574 = dma.done [#allocation5], 128
        $region96: #{temporal_conv_net.1} parent=87 // pred_fallthru
          _
        // Predicated region
        $region97: #{temporal_conv_net.1} parent=87 // pred_check
          %p575 = pneg %p117
        $region98: #{temporal_conv_net.1} parent=87 // pred_check_branch
          %577 = sbr.rel (%p575) target = $region100
        $region99: #{temporal_conv_net.1} parent=87 // pred_region
          %578 = dma.done [#allocation5], 64
        $region100: #{temporal_conv_net.1} parent=87 // pred_fallthru
          _
        // Predicated region
        $region101: #{temporal_conv_net.1} parent=87 // pred_check
          %p579 = pneg %p138
        $region102: #{temporal_conv_net.1} parent=87 // pred_check_branch
          %581 = sbr.rel (%p579) target = $region104
        $region103: #{temporal_conv_net.1} parent=87 // pred_region
          %582 = dma.done [#allocation8], 128
        $region104: #{temporal_conv_net.1} parent=87 // pred_fallthru
          _
        // Predicated region
        $region105: #{temporal_conv_net.1} parent=87 // pred_check
          %p583 = pneg %p159
        $region106: #{temporal_conv_net.1} parent=87 // pred_check_branch
          %585 = sbr.rel (%p583) target = $region108
        $region107: #{temporal_conv_net.1} parent=87 // pred_region
          %586 = dma.done [#allocation8], 64
        $region108: #{temporal_conv_net.1} parent=87 // pred_fallthru
          _
        // Predicated region
        $region109: #{temporal_conv_net.1} parent=87 // pred_check
          %p587 = pneg %p180
        $region110: #{temporal_conv_net.1} parent=87 // pred_check_branch
          %589 = sbr.rel (%p587) target = $region112
        $region111: #{temporal_conv_net.1} parent=87 // pred_region
          %590 = dma.done [#allocation11], 128
        $region112: #{temporal_conv_net.1} parent=87 // pred_fallthru
          _
        // Predicated region
        $region113: #{temporal_conv_net.1} parent=87 // pred_check
          %p591 = pneg %p201
        $region114: #{temporal_conv_net.1} parent=87 // pred_check_branch
          %593 = sbr.rel (%p591) target = $region116
        $region115: #{temporal_conv_net.1} parent=87 // pred_region
          %594 = dma.done [#allocation11], 128
        $region116: #{temporal_conv_net.1} parent=87 // pred_fallthru
          _
        // Predicated region
        $region117: #{temporal_conv_net.1} parent=87 // pred_check
          %p595 = pneg %p222
        $region118: #{temporal_conv_net.1} parent=87 // pred_check_branch
          %597 = sbr.rel (%p595) target = $region120
        $region119: #{temporal_conv_net.1} parent=87 // pred_region
          %598 = dma.done [#allocation14], 256
        $region120: #{temporal_conv_net.1} parent=87 // pred_fallthru
          _
        %s599 = smul.u32 2, %s33
        %p600 = scmp.lt.s32.totalorder %s599, 3
        %s601 = scalar_select %p600, %s599, 3
        %s602 = smul.addr %s601, 4
        %s603 = scalar_lea.vmem %s0, %s602
        %p604 = pneg %p54
        %p605 = pneg %p51
        %p606 = pneg %p75
        %p607 = pneg %p72
        %p608 = pneg %p96
        %p609 = pneg %p93
        %p610 = pneg %p117
        %p611 = pneg %p114
        %p612 = pneg %p138
        %p613 = pneg %p135
        %p614 = pneg %p159
        %p615 = pneg %p156
        %p616 = pneg %p180
        %p617 = pneg %p177
        %p618 = pneg %p201
        %p619 = pneg %p198
        %p620 = pneg %p222
        %p621 = pneg %p219
        %p622 = pneg %p243
        %p623 = pneg %p240
        %p624 = pneg %p264
        %p625 = pneg %p261
        %p626 = pneg %p285
        %p627 = pneg %p282
        %p628 = pneg %p306
        %p629 = pneg %p303
        %p630 = pneg %p327
        %p631 = pneg %p324
        %p632 = pneg %p348
        %p633 = pneg %p345
        %p634 = pneg %p369
        %p635 = pneg %p366
        %p636 = pneg %p390
        %p637 = pneg %p387
        %p638 = pneg %p416
        %p639 = pneg %p413
        %s640 = sand.u32 %s403, 1
        %s641 = sand.u32 %s403, 1
        %s642 = smul.addr %s641, 32
        %s643 = scalar_lea.vmem [#allocation15], %s642
        %s644 = smul.u32 2, %s33
        %p645 = scmp.lt.s32.totalorder %s644, 3
        %s646 = scalar_select %p645, %s644, 3
        %s647 = smul.addr %s646, 4
        %s648 = scalar_lea.vmem %s0, %s647
        %s649 = smul.u32 2, %s33
        %s650 = smul.u32 2, %s33
        %v652 = vlaneseq
        %v653 = vand.u32 %v652, 127
        %v654 = vadd.s32 %v653, 128
        %vm655 = vcmp.lt.s32.totalorder %v653, 0
        %v656 = vsub.s32 0, %v653
        %v657 = vsel %vm655, %v656, %v653
        %v658 = vshrl.u32 %v657, 7
        %v659 = vand.u32 %v657, 127
        %v660 = vsub.s32 0, %v659
        %v661 = vsel %vm655, %v660, %v659
        %vm662 = vcmp.lt.s32.totalorder %v654, 0
        %v663 = vsub.s32 0, %v654
        %v664 = vsel %vm662, %v663, %v654
        %v665 = vshrl.u32 %v664, 7
        %v666 = vand.u32 %v664, 127
        %v667 = vsub.s32 0, %v666
        %v668 = vsel %vm662, %v667, %v666
        %vm669 = vcmp.ne.s32.totalorder %v661, 0
        %vm670 = vcmp.ne.s32.totalorder %v668, 0
        %vm671 = vcmp.lt.s32.totalorder %v661, 0
        %vm672 = vcmp.lt.s32.totalorder %v668, 0
        %vm673 = vmand %vm671, %vm669
        %vm674 = vmand %vm672, %vm670
        %v675 = vadd.s32 %v661, 128
        %v676 = vadd.s32 %v668, 128
        %v677 = vsel %vm673, %v675, %v661
        %v678 = vsel %vm674, %v676, %v668
        %v679 = vld [vmem:[%s648] sm:$0xff]
        %v680 = vunpack.c.l.bf16 %v679
        %v681 = vunpack.c.h.bf16 %v679
        %vm682 = vcmp.ge.s32.totalorder %v677, 1
        %vm683 = vcmp.ge.s32.totalorder %v678, 1
        %vm684 = vcmp.lt.s32.totalorder %v677, 129
        %vm685 = vcmp.lt.s32.totalorder %v678, 129
        %vm686 = vmand %vm682, %vm684
        %vm687 = vmand %vm683, %vm685
        %v688 = vsel %vm686, 1, 0
        %v689 = vsel %vm687, 1, 0
        %vm690 = vcmp.eq.s32.totalorder %v688, 1
        %vm691 = vcmp.eq.s32.totalorder %v689, 1
        %695 = vrot.lane.b32.xlu0 0.0, 1
        %v696 = vpop.permute.xlu0 %695
        %697 = vrot.lane.b32.xlu0 %v680, 1
        %v698 = vpop.permute.xlu0 %697
        %699 = vrot.lane.b32.xlu0 %v681, 1
        %v700 = vpop.permute.xlu0 %699
        %vm701 = vcmask 7168
        %v702 = vsel %vm701, %v696, %v698
        %v703 = vsel %vm701, %v698, %v700
        %v706 = vsel %vm690, %v702, 0.0
        %v707 = vsel %vm691, %v703, 0.0
        %vm708 = vcmp.ge.s32.totalorder %v677, 4294967295
        %vm709 = vcmp.ge.s32.totalorder %v678, 4294967295
        %vm710 = vcmp.lt.s32.totalorder %v677, 127
        %vm711 = vcmp.lt.s32.totalorder %v678, 127
        %vm712 = vmand %vm708, %vm710
        %vm713 = vmand %vm709, %vm711
        %v714 = vsel %vm712, 1, 0
        %v715 = vsel %vm713, 1, 0
        %vm716 = vcmp.eq.s32.totalorder %v714, 1
        %vm717 = vcmp.eq.s32.totalorder %v715, 1
        %718 = vrot.lane.b32.xlu0 %v680, 127
        %v719 = vpop.permute.xlu0 %718
        %720 = vrot.lane.b32.xlu0 %v681, 127
        %v721 = vpop.permute.xlu0 %720
        %722 = vrot.lane.b32.xlu0 0.0, 127
        %v723 = vpop.permute.xlu0 %722
        %vm724 = vcmask 1039360
        %v725 = vsel %vm724, %v719, %v721
        %v726 = vsel %vm724, %v721, %v723
        %v729 = vsel %vm716, %v725, 0.0
        %v730 = vsel %vm717, %v726, 0.0
        %v731 = vld [vmem:[#allocation2] sm:$0xf]
        %v732 = vpack.c.bf16 %v680, %v706
        %v733 = vpack.c.bf16 %v681, %v707
        %v734 = vpack.c.bf16 %v729, %v729
        %v735 = vpack.c.bf16 %v730, %v730
        %v736 = vld [vmem:[#allocation4] sm:$0xff]
        %738 = vset.pattern.permute.xlu0 0
        %739 = vperm.xlu0 %738, %v736
        %v740 = vpop.permute.xlu0 %739
        %vm742 = vcmask 195584
        %v744 = vsel %vm742, %v731, 0
        %vm746 = vcmask 1043456
        %v748 = vsel %vm746, %v734, 0
        %v751 = vsel %vm746, %v735, 0
        %753 = vmatprep.subr.bf16.mxu0 %v733
        %754 = vmatpush1.bf16.msra.mxu0 %v732
        %755 = vmatprep.subr.bf16.mxu0 %v751
        %756 = vmatpush1.bf16.msra.mxu0 %v748
        %757 = vmatprep.subr.bf16.mxu0 0
        %758 = vmatpush1.bf16.msra.mxu0 0
        %759 = vmatprep.subr.bf16.mxu0 0
        %760 = vmatpush1.bf16.msra.mxu0 0
        %761 = vmatprep.subr.bf16.mxu0 0
        %762 = vmatpush1.bf16.msra.mxu0 0
        %763 = vmatprep.subr.bf16.mxu0 0
        %764 = vmatpush1.bf16.msra.mxu0 0
        %765 = vmatprep.subr.bf16.mxu0 0
        %766 = vmatpush1.bf16.msra.mxu0 0
        %767 = vmatprep.subr.bf16.mxu0 0
        %768 = vmatpush1.bf16.msra.mxu0 0
        %769 = vmatprep.subr.bf16.mxu0 0
        %770 = vmatpush1.bf16.msra.mxu0 0
        %771 = vmatprep.subr.bf16.mxu0 0
        %772 = vmatpush1.bf16.msra.mxu0 0
        %773 = vmatprep.subr.bf16.mxu0 0
        %774 = vmatpush1.bf16.msra.mxu0 0
        %775 = vmatprep.subr.bf16.mxu0 0
        %776 = vmatpush1.bf16.msra.mxu0 0
        %777 = vmatprep.subr.bf16.mxu0 0
        %778 = vmatpush1.bf16.msra.mxu0 0
        %779 = vmatprep.subr.bf16.mxu0 0
        %780 = vmatpush1.bf16.msra.mxu0 0
        %781 = vmatprep.subr.bf16.mxu0 0
        %782 = vmatpush1.bf16.msra.mxu0 0
        %783 = vmatprep.subr.bf16.mxu0 0
        %784 = vmatpush1.bf16.msra.mxu0 0
        %785 = vmatprep.mubr.bf16.mxu0 0
        %786 = vmatmul.mubr.bf16.gmra.mrb[0].mxu0 %v744
        %v787 = vpop.f32.mrb[0].mxu0
        %v788 = vadd.f32 %v740, %v787
        %v789 = vpop.f32.mrb[0].mxu0
        %v790 = vadd.f32 %v740, %v789
        %v791 = vpop.f32.mrb[0].mxu0
        %v792 = vpop.f32.mrb[0].mxu0
        %793 = vdwg.mxu0
        %v794 = vmax.f32 %v788, 0.0
        %v795 = vmax.f32 %v790, 0.0
        %798 = vrot.lane.b32.xlu0 %v794, 1
        %v799 = vpop.permute.xlu0 %798
        %800 = vrot.lane.b32.xlu0 %v795, 1
        %v801 = vpop.permute.xlu0 %800
        %v802 = vsel %vm701, %v696, %v799
        %v803 = vsel %vm701, %v799, %v801
        %v806 = vsel %vm690, %v802, 0.0
        %v807 = vsel %vm691, %v803, 0.0
        %808 = vrot.lane.b32.xlu0 %v794, 127
        %v809 = vpop.permute.xlu0 %808
        %810 = vrot.lane.b32.xlu0 %v795, 127
        %v811 = vpop.permute.xlu0 %810
        %v812 = vsel %vm724, %v809, %v811
        %v813 = vsel %vm724, %v811, %v723
        %v816 = vsel %vm716, %v812, 0.0
        %v817 = vsel %vm717, %v813, 0.0
        %v818 = vld [vmem:[#allocation6] sm:$0xf]
        %v819 = vpack.c.bf16 %v794, %v806
        %v820 = vpack.c.bf16 %v795, %v807
        %v821 = vpack.c.bf16 %v816, %v816
        %v822 = vpack.c.bf16 %v817, %v817
        %v823 = vld [vmem:[#allocation7] sm:$0xff]
        %825 = vset.pattern.permute.xlu0 0
        %826 = vperm.xlu0 %825, %v823
        %v827 = vpop.permute.xlu0 %826
        %v830 = vsel %vm742, %v818, 0
        %v833 = vsel %vm746, %v821, 0
        %v836 = vsel %vm746, %v822, 0
        %838 = vmatprep.subr.bf16.mxu0 %v820
        %839 = vmatpush1.bf16.msra.mxu0 %v819
        %840 = vmatprep.subr.bf16.mxu0 %v836
        %841 = vmatpush1.bf16.msra.mxu0 %v833
        %842 = vmatprep.subr.bf16.mxu0 0
        %843 = vmatpush1.bf16.msra.mxu0 0
        %844 = vmatprep.subr.bf16.mxu0 0
        %845 = vmatpush1.bf16.msra.mxu0 0
        %846 = vmatprep.subr.bf16.mxu0 0
        %847 = vmatpush1.bf16.msra.mxu0 0
        %848 = vmatprep.subr.bf16.mxu0 0
        %849 = vmatpush1.bf16.msra.mxu0 0
        %850 = vmatprep.subr.bf16.mxu0 0
        %851 = vmatpush1.bf16.msra.mxu0 0
        %852 = vmatprep.subr.bf16.mxu0 0
        %853 = vmatpush1.bf16.msra.mxu0 0
        %854 = vmatprep.subr.bf16.mxu0 0
        %855 = vmatpush1.bf16.msra.mxu0 0
        %856 = vmatprep.subr.bf16.mxu0 0
        %857 = vmatpush1.bf16.msra.mxu0 0
        %858 = vmatprep.subr.bf16.mxu0 0
        %859 = vmatpush1.bf16.msra.mxu0 0
        %860 = vmatprep.subr.bf16.mxu0 0
        %861 = vmatpush1.bf16.msra.mxu0 0
        %862 = vmatprep.subr.bf16.mxu0 0
        %863 = vmatpush1.bf16.msra.mxu0 0
        %864 = vmatprep.subr.bf16.mxu0 0
        %865 = vmatpush1.bf16.msra.mxu0 0
        %866 = vmatprep.subr.bf16.mxu0 0
        %867 = vmatpush1.bf16.msra.mxu0 0
        %868 = vmatprep.subr.bf16.mxu0 0
        %869 = vmatpush1.bf16.msra.mxu0 0
        %870 = vmatprep.mubr.bf16.mxu0 0
        %871 = vmatmul.mubr.bf16.gmra.mrb[0].mxu0 %v830
        %v872 = vpop.f32.mrb[0].mxu0
        %v873 = vadd.f32 %v827, %v872
        %v874 = vpop.f32.mrb[0].mxu0
        %v875 = vadd.f32 %v827, %v874
        %v876 = vpop.f32.mrb[0].mxu0
        %v877 = vpop.f32.mrb[0].mxu0
        %878 = vdwg.mxu0
        %v879 = vmax.f32 %v873, 0.0
        %v880 = vmax.f32 %v875, 0.0
        %v881 = vld [vmem:[#allocation9] sm:$0xf]
        %v882 = vld [vmem:[#allocation10] sm:$0xff]
        %884 = vset.pattern.permute.xlu0 0
        %885 = vperm.xlu0 %884, %v882
        %v886 = vpop.permute.xlu0 %885
        %v889 = vunpack.c.l.b16 %v679
        %v890 = vunpack.c.h.b16 %v679
        %v891 = vpack.c.b16 %v889, %v889
        %v892 = vpack.c.b16 %v890, %v890
        %vm893 = vcmask 64512
        %v895 = vsel %vm893, %v881, 0
        %v898 = vsel %vm746, %v891, 0
        %v901 = vsel %vm746, %v892, 0
        %903 = vmatprep.subr.bf16.mxu0 %v901
        %904 = vmatpush1.bf16.msra.mxu0 %v898
        %905 = vmatprep.subr.bf16.mxu0 0
        %906 = vmatpush1.bf16.msra.mxu0 0
        %907 = vmatprep.subr.bf16.mxu0 0
        %908 = vmatpush1.bf16.msra.mxu0 0
        %909 = vmatprep.subr.bf16.mxu0 0
        %910 = vmatpush1.bf16.msra.mxu0 0
        %911 = vmatprep.subr.bf16.mxu0 0
        %912 = vmatpush1.bf16.msra.mxu0 0
        %913 = vmatprep.subr.bf16.mxu0 0
        %914 = vmatpush1.bf16.msra.mxu0 0
        %915 = vmatprep.subr.bf16.mxu0 0
        %916 = vmatpush1.bf16.msra.mxu0 0
        %917 = vmatprep.subr.bf16.mxu0 0
        %918 = vmatpush1.bf16.msra.mxu0 0
        %919 = vmatprep.subr.bf16.mxu0 0
        %920 = vmatpush1.bf16.msra.mxu0 0
        %921 = vmatprep.subr.bf16.mxu0 0
        %922 = vmatpush1.bf16.msra.mxu0 0
        %923 = vmatprep.subr.bf16.mxu0 0
        %924 = vmatpush1.bf16.msra.mxu0 0
        %925 = vmatprep.subr.bf16.mxu0 0
        %926 = vmatpush1.bf16.msra.mxu0 0
        %927 = vmatprep.subr.bf16.mxu0 0
        %928 = vmatpush1.bf16.msra.mxu0 0
        %929 = vmatprep.subr.bf16.mxu0 0
        %930 = vmatpush1.bf16.msra.mxu0 0
        %931 = vmatprep.subr.bf16.mxu0 0
        %932 = vmatpush1.bf16.msra.mxu0 0
        %933 = vmatprep.subr.bf16.mxu0 0
        %934 = vmatpush1.bf16.msra.mxu0 0
        %935 = vmatprep.mubr.bf16.mxu0 0
        %936 = vmatmul.mubr.bf16.gmra.mrb[0].mxu0 %v895
        %v937 = vpop.f32.mrb[0].mxu0
        %v938 = vadd.f32 %v886, %v937
        %v939 = vpop.f32.mrb[0].mxu0
        %v940 = vadd.f32 %v886, %v939
        %v941 = vpop.f32.mrb[0].mxu0
        %v942 = vpop.f32.mrb[0].mxu0
        %943 = vdwg.mxu0
        %v944 = vadd.f32 %v879, %v938
        %v945 = vadd.f32 %v880, %v940
        %v946 = vmax.f32 %v944, 0.0
        %v947 = vmax.f32 %v945, 0.0
        %vm948 = vcmp.ge.s32.totalorder %v677, 2
        %vm949 = vcmp.ge.s32.totalorder %v678, 2
        %vm950 = vcmp.lt.s32.totalorder %v677, 130
        %vm951 = vcmp.lt.s32.totalorder %v678, 130
        %vm952 = vmand %vm948, %vm950
        %vm953 = vmand %vm949, %vm951
        %v954 = vsel %vm952, 1, 0
        %v955 = vsel %vm953, 1, 0
        %vm956 = vcmp.eq.s32.totalorder %v954, 1
        %vm957 = vcmp.eq.s32.totalorder %v955, 1
        %960 = vrot.lane.b32.xlu0 0.0, 2
        %v961 = vpop.permute.xlu0 %960
        %962 = vrot.lane.b32.xlu0 %v946, 2
        %v963 = vpop.permute.xlu0 %962
        %964 = vrot.lane.b32.xlu0 %v947, 2
        %v965 = vpop.permute.xlu0 %964
        %vm966 = vcmask 15360
        %v967 = vsel %vm966, %v961, %v963
        %v968 = vsel %vm966, %v963, %v965
        %v971 = vsel %vm956, %v967, 0.0
        %v972 = vsel %vm957, %v968, 0.0
        %vm973 = vcmp.ge.s32.totalorder %v677, 4294967294
        %vm974 = vcmp.ge.s32.totalorder %v678, 4294967294
        %vm975 = vcmp.lt.s32.totalorder %v677, 126
        %vm976 = vcmp.lt.s32.totalorder %v678, 126
        %vm977 = vmand %vm973, %vm975
        %vm978 = vmand %vm974, %vm976
        %v979 = vsel %vm977, 1, 0
        %v980 = vsel %vm978, 1, 0
        %vm981 = vcmp.eq.s32.totalorder %v979, 1
        %vm982 = vcmp.eq.s32.totalorder %v980, 1
        %983 = vrot.lane.b32.xlu0 %v946, 126
        %v984 = vpop.permute.xlu0 %983
        %985 = vrot.lane.b32.xlu0 %v947, 126
        %v986 = vpop.permute.xlu0 %985
        %987 = vrot.lane.b32.xlu0 0.0, 126
        %v988 = vpop.permute.xlu0 %987
        %vm989 = vcmask 1031168
        %v990 = vsel %vm989, %v984, %v986
        %v991 = vsel %vm989, %v986, %v988
        %v994 = vsel %vm981, %v990, 0.0
        %v995 = vsel %vm982, %v991, 0.0
        %v996 = vld [vmem:[#allocation12] sm:$0xf]
        %v997 = vld [vmem:[#allocation12 + $0x4] sm:$0xf]
        %v998 = vpack.c.bf16 %v946, %v971
        %v999 = vpack.c.bf16 %v947, %v972
        %v1000 = vpack.c.bf16 %v994, %v994
        %v1001 = vpack.c.bf16 %v995, %v995
        %v1002 = vld [vmem:[#allocation13] sm:$0xff]
        %v1003 = vld [vmem:[#allocation13 + $0x8] sm:$0xff]
        %1005 = vset.pattern.permute.xlu0 0
        %1006 = vperm.xlu0 %1005, %v1002
        %v1007 = vpop.permute.xlu0 %1006
        %1010 = vset.pattern.permute.xlu0 0
        %1011 = vperm.xlu0 %1010, %v1003
        %v1012 = vpop.permute.xlu0 %1011
        %v1016 = vunpack.c.l.b16 %v996
        %v1017 = vunpack.c.l.b16 %v997
        %v1018 = vpack.c.b16 %v1017, %v1016
        %v1020 = vsel %vm742, %v1018, 0
        %v1023 = vsel %vm746, %v1000, 0
        %v1026 = vsel %vm746, %v1001, 0
        %1028 = vmatprep.subr.bf16.mxu0 %v999
        %1029 = vmatpush1.bf16.msra.mxu0 %v998
        %1030 = vmatprep.subr.bf16.mxu0 %v1026
        %1031 = vmatpush1.bf16.msra.mxu0 %v1023
        %1032 = vmatprep.subr.bf16.mxu0 0
        %1033 = vmatpush1.bf16.msra.mxu0 0
        %1034 = vmatprep.subr.bf16.mxu0 0
        %1035 = vmatpush1.bf16.msra.mxu0 0
        %1036 = vmatprep.subr.bf16.mxu0 0
        %1037 = vmatpush1.bf16.msra.mxu0 0
        %1038 = vmatprep.subr.bf16.mxu0 0
        %1039 = vmatpush1.bf16.msra.mxu0 0
        %1040 = vmatprep.subr.bf16.mxu0 0
        %1041 = vmatpush1.bf16.msra.mxu0 0
        %1042 = vmatprep.subr.bf16.mxu0 0
        %1043 = vmatpush1.bf16.msra.mxu0 0
        %1044 = vmatprep.subr.bf16.mxu0 0
        %1045 = vmatpush1.bf16.msra.mxu0 0
        %1046 = vmatprep.subr.bf16.mxu0 0
        %1047 = vmatpush1.bf16.msra.mxu0 0
        %1048 = vmatprep.subr.bf16.mxu0 0
        %1049 = vmatpush1.bf16.msra.mxu0 0
        %1050 = vmatprep.subr.bf16.mxu0 0
        %1051 = vmatpush1.bf16.msra.mxu0 0
        %1052 = vmatprep.subr.bf16.mxu0 0
        %1053 = vmatpush1.bf16.msra.mxu0 0
        %1054 = vmatprep.subr.bf16.mxu0 0
        %1055 = vmatpush1.bf16.msra.mxu0 0
        %1056 = vmatprep.subr.bf16.mxu0 0
        %1057 = vmatpush1.bf16.msra.mxu0 0
        %1058 = vmatprep.subr.bf16.mxu0 0
        %1059 = vmatpush1.bf16.msra.mxu0 0
        %1060 = vmatprep.mubr.bf16.mxu0 0
        %1061 = vmatmul.mubr.bf16.gmra.mrb[0].mxu0 %v1020
        %v1062 = vpop.f32.mrb[0].mxu0
        %v1063 = vadd.f32 %v1007, %v1062
        %v1064 = vpop.f32.mrb[0].mxu0
        %v1065 = vadd.f32 %v1007, %v1064
        %v1066 = vpop.f32.mrb[0].mxu0
        %v1067 = vadd.f32 %v1012, %v1066
        %v1068 = vpop.f32.mrb[0].mxu0
        %v1069 = vadd.f32 %v1012, %v1068
        %1070 = vdwg.mxu0
        %v1071 = vmax.f32 %v1063, 0.0
        %v1072 = vmax.f32 %v1065, 0.0
        %v1073 = vmax.f32 %v1067, 0.0
        %v1074 = vmax.f32 %v1069, 0.0
        %1079 = vrot.lane.b32.xlu0 %v1071, 2
        %v1080 = vpop.permute.xlu0 %1079
        %1081 = vrot.lane.b32.xlu0 %v1072, 2
        %v1082 = vpop.permute.xlu0 %1081
        %1083 = vrot.lane.b32.xlu0 %v1073, 2
        %v1084 = vpop.permute.xlu0 %1083
        %1085 = vrot.lane.b32.xlu0 %v1074, 2
        %v1086 = vpop.permute.xlu0 %1085
        %v1087 = vsel %vm966, %v961, %v1080
        %v1088 = vsel %vm966, %v1080, %v1082
        %v1089 = vsel %vm966, %v961, %v1084
        %v1090 = vsel %vm966, %v1084, %v1086
        %v1095 = vsel %vm956, %v1087, 0.0
        %v1096 = vsel %vm957, %v1088, 0.0
        %v1097 = vsel %vm956, %v1089, 0.0
        %v1098 = vsel %vm957, %v1090, 0.0
        %1099 = vrot.lane.b32.xlu0 %v1071, 126
        %v1100 = vpop.permute.xlu0 %1099
        %1101 = vrot.lane.b32.xlu0 %v1072, 126
        %v1102 = vpop.permute.xlu0 %1101
        %1103 = vrot.lane.b32.xlu0 %v1073, 126
        %v1104 = vpop.permute.xlu0 %1103
        %1105 = vrot.lane.b32.xlu0 %v1074, 126
        %v1106 = vpop.permute.xlu0 %1105
        %v1107 = vsel %vm989, %v1100, %v1102
        %v1108 = vsel %vm989, %v1102, %v988
        %v1109 = vsel %vm989, %v1104, %v1106
        %v1110 = vsel %vm989, %v1106, %v988
        %v1115 = vsel %vm981, %v1107, 0.0
        %v1116 = vsel %vm982, %v1108, 0.0
        %v1117 = vsel %vm981, %v1109, 0.0
        %v1118 = vsel %vm982, %v1110, 0.0
        %v1119 = vld [vmem:[%s9] sm:$0xf]
        %v1120 = vld [vmem:[%s9 + $0x4] sm:$0xf]
        %v1121 = vpack.c.bf16 %v1097, %v1095
        %v1122 = vpack.c.bf16 %v1098, %v1096
        %v1123 = vpack.c.bf16 %v1073, %v1071
        %v1124 = vpack.c.bf16 %v1074, %v1072
        %v1125 = vpack.c.bf16 %v1117, %v1115
        %v1126 = vpack.c.bf16 %v1118, %v1116
        %v1127 = vld [vmem:[%s10] sm:$0xff]
        %v1128 = vld [vmem:[%s10 + $0x8] sm:$0xff]
        %1130 = vset.pattern.permute.xlu0 0
        %1131 = vperm.xlu0 %1130, %v1127
        %v1132 = vpop.permute.xlu0 %1131
        %1135 = vset.pattern.permute.xlu0 0
        %1136 = vperm.xlu0 %1135, %v1128
        %v1137 = vpop.permute.xlu0 %1136
        %v1141 = vunpack.c.l.b16 %v1119
        %v1142 = vunpack.c.l.b16 %v1120
        %v1143 = vpack.c.b16 %v1142, %v1141
        %vm1144 = vcmask 392192
        %v1146 = vsel %vm1144, %v1143, 0
        %1148 = vmatprep.subr.bf16.mxu0 %v1122
        %1149 = vmatpush1.bf16.msra.mxu0 %v1121
        %1150 = vmatprep.subr.bf16.mxu0 %v1124
        %1151 = vmatpush1.bf16.msra.mxu0 %v1123
        %1152 = vmatprep.subr.bf16.mxu0 %v1126
        %1153 = vmatpush1.bf16.msra.mxu0 %v1125
        %1154 = vmatprep.subr.bf16.mxu0 0
        %1155 = vmatpush1.bf16.msra.mxu0 0
        %1156 = vmatprep.subr.bf16.mxu0 0
        %1157 = vmatpush1.bf16.msra.mxu0 0
        %1158 = vmatprep.subr.bf16.mxu0 0
        %1159 = vmatpush1.bf16.msra.mxu0 0
        %1160 = vmatprep.subr.bf16.mxu0 0
        %1161 = vmatpush1.bf16.msra.mxu0 0
        %1162 = vmatprep.subr.bf16.mxu0 0
        %1163 = vmatpush1.bf16.msra.mxu0 0
        %1164 = vmatprep.subr.bf16.mxu0 0
        %1165 = vmatpush1.bf16.msra.mxu0 0
        %1166 = vmatprep.subr.bf16.mxu0 0
        %1167 = vmatpush1.bf16.msra.mxu0 0
        %1168 = vmatprep.subr.bf16.mxu0 0
        %1169 = vmatpush1.bf16.msra.mxu0 0
        %1170 = vmatprep.subr.bf16.mxu0 0
        %1171 = vmatpush1.bf16.msra.mxu0 0
        %1172 = vmatprep.subr.bf16.mxu0 0
        %1173 = vmatpush1.bf16.msra.mxu0 0
        %1174 = vmatprep.subr.bf16.mxu0 0
        %1175 = vmatpush1.bf16.msra.mxu0 0
        %1176 = vmatprep.subr.bf16.mxu0 0
        %1177 = vmatpush1.bf16.msra.mxu0 0
        %1178 = vmatprep.subr.bf16.mxu0 0
        %1179 = vmatpush1.bf16.msra.mxu0 0
        %1180 = vmatprep.mubr.bf16.mxu0 0
        %1181 = vmatmul.mubr.bf16.gmra.mrb[0].mxu0 %v1146
        %v1182 = vpop.f32.mrb[0].mxu0
        %v1183 = vadd.f32 %v1132, %v1182
        %v1184 = vpop.f32.mrb[0].mxu0
        %v1185 = vadd.f32 %v1132, %v1184
        %v1186 = vpop.f32.mrb[0].mxu0
        %v1187 = vadd.f32 %v1137, %v1186
        %v1188 = vpop.f32.mrb[0].mxu0
        %v1189 = vadd.f32 %v1137, %v1188
        %1190 = vdwg.mxu0
        %v1191 = vmax.f32 %v1183, 0.0
        %v1192 = vmax.f32 %v1185, 0.0
        %v1193 = vmax.f32 %v1187, 0.0
        %v1194 = vmax.f32 %v1189, 0.0
        %v1195 = vld [vmem:[%s11] sm:$0xf]
        %v1196 = vld [vmem:[%s11 + $0x4] sm:$0xf]
        %v1197 = vpack.c.bf16 %v946, %v946
        %v1198 = vpack.c.bf16 %v947, %v947
        %v1199 = vld [vmem:[%s12] sm:$0xff]
        %v1200 = vld [vmem:[%s12 + $0x8] sm:$0xff]
        %1202 = vset.pattern.permute.xlu0 0
        %1203 = vperm.xlu0 %1202, %v1199
        %v1204 = vpop.permute.xlu0 %1203
        %1207 = vset.pattern.permute.xlu0 0
        %1208 = vperm.xlu0 %1207, %v1200
        %v1209 = vpop.permute.xlu0 %1208
        %v1213 = vunpack.c.l.b16 %v1195
        %v1214 = vunpack.c.l.b16 %v1196
        %v1215 = vpack.c.b16 %v1214, %v1213
        %v1217 = vsel %vm893, %v1215, 0
        %v1220 = vsel %vm746, %v1197, 0
        %v1223 = vsel %vm746, %v1198, 0
        %1225 = vmatprep.subr.bf16.mxu0 %v1223
        %1226 = vmatpush1.bf16.msra.mxu0 %v1220
        %1227 = vmatprep.subr.bf16.mxu0 0
        %1228 = vmatpush1.bf16.msra.mxu0 0
        %1229 = vmatprep.subr.bf16.mxu0 0
        %1230 = vmatpush1.bf16.msra.mxu0 0
        %1231 = vmatprep.subr.bf16.mxu0 0
        %1232 = vmatpush1.bf16.msra.mxu0 0
        %1233 = vmatprep.subr.bf16.mxu0 0
        %1234 = vmatpush1.bf16.msra.mxu0 0
        %1235 = vmatprep.subr.bf16.mxu0 0
        %1236 = vmatpush1.bf16.msra.mxu0 0
        %1237 = vmatprep.subr.bf16.mxu0 0
        %1238 = vmatpush1.bf16.msra.mxu0 0
        %1239 = vmatprep.subr.bf16.mxu0 0
        %1240 = vmatpush1.bf16.msra.mxu0 0
        %1241 = vmatprep.subr.bf16.mxu0 0
        %1242 = vmatpush1.bf16.msra.mxu0 0
        %1243 = vmatprep.subr.bf16.mxu0 0
        %1244 = vmatpush1.bf16.msra.mxu0 0
        %1245 = vmatprep.subr.bf16.mxu0 0
        %1246 = vmatpush1.bf16.msra.mxu0 0
        %1247 = vmatprep.subr.bf16.mxu0 0
        %1248 = vmatpush1.bf16.msra.mxu0 0
        %1249 = vmatprep.subr.bf16.mxu0 0
        %1250 = vmatpush1.bf16.msra.mxu0 0
        %1251 = vmatprep.subr.bf16.mxu0 0
        %1252 = vmatpush1.bf16.msra.mxu0 0
        %1253 = vmatprep.subr.bf16.mxu0 0
        %1254 = vmatpush1.bf16.msra.mxu0 0
        %1255 = vmatprep.subr.bf16.mxu0 0
        %1256 = vmatpush1.bf16.msra.mxu0 0
        %1257 = vmatprep.mubr.bf16.mxu0 0
        %1258 = vmatmul.mubr.bf16.gmra.mrb[0].mxu0 %v1217
        %v1259 = vpop.f32.mrb[0].mxu0
        %v1260 = vadd.f32 %v1204, %v1259
        %v1261 = vpop.f32.mrb[0].mxu0
        %v1262 = vadd.f32 %v1204, %v1261
        %v1263 = vpop.f32.mrb[0].mxu0
        %v1264 = vadd.f32 %v1209, %v1263
        %v1265 = vpop.f32.mrb[0].mxu0
        %v1266 = vadd.f32 %v1209, %v1265
        %1267 = vdwg.mxu0
        %v1268 = vadd.f32 %v1191, %v1260
        %v1269 = vadd.f32 %v1192, %v1262
        %v1270 = vadd.f32 %v1193, %v1264
        %v1271 = vadd.f32 %v1194, %v1266
        %v1272 = vmax.f32 %v1268, 0.0
        %v1273 = vmax.f32 %v1269, 0.0
        %v1274 = vmax.f32 %v1270, 0.0
        %v1275 = vmax.f32 %v1271, 0.0
        %vm1276 = vcmp.ge.s32.totalorder %v677, 4
        %vm1277 = vcmp.ge.s32.totalorder %v678, 4
        %vm1278 = vcmp.lt.s32.totalorder %v677, 132
        %vm1279 = vcmp.lt.s32.totalorder %v678, 132
        %vm1280 = vmand %vm1276, %vm1278
        %vm1281 = vmand %vm1277, %vm1279
        %v1282 = vsel %vm1280, 1, 0
        %v1283 = vsel %vm1281, 1, 0
        %vm1284 = vcmp.eq.s32.totalorder %v1282, 1
        %vm1285 = vcmp.eq.s32.totalorder %v1283, 1
        %1290 = vrot.lane.b32.xlu0 0.0, 4
        %v1291 = vpop.permute.xlu0 %1290
        %1292 = vrot.lane.b32.xlu0 %v1272, 4
        %v1293 = vpop.permute.xlu0 %1292
        %1294 = vrot.lane.b32.xlu0 %v1273, 4
        %v1295 = vpop.permute.xlu0 %1294
        %1296 = vrot.lane.b32.xlu0 %v1274, 4
        %v1297 = vpop.permute.xlu0 %1296
        %1298 = vrot.lane.b32.xlu0 %v1275, 4
        %v1299 = vpop.permute.xlu0 %1298
        %vm1300 = vcmask 31744
        %v1301 = vsel %vm1300, %v1291, %v1293
        %v1302 = vsel %vm1300, %v1293, %v1295
        %v1303 = vsel %vm1300, %v1291, %v1297
        %v1304 = vsel %vm1300, %v1297, %v1299
        %v1309 = vsel %vm1284, %v1301, 0.0
        %v1310 = vsel %vm1285, %v1302, 0.0
        %v1311 = vsel %vm1284, %v1303, 0.0
        %v1312 = vsel %vm1285, %v1304, 0.0
        %vm1313 = vcmp.ge.s32.totalorder %v677, 4294967292
        %vm1314 = vcmp.ge.s32.totalorder %v678, 4294967292
        %vm1315 = vcmp.lt.s32.totalorder %v677, 124
        %vm1316 = vcmp.lt.s32.totalorder %v678, 124
        %vm1317 = vmand %vm1313, %vm1315
        %vm1318 = vmand %vm1314, %vm1316
        %v1319 = vsel %vm1317, 1, 0
        %v1320 = vsel %vm1318, 1, 0
        %vm1321 = vcmp.eq.s32.totalorder %v1319, 1
        %vm1322 = vcmp.eq.s32.totalorder %v1320, 1
        %1323 = vrot.lane.b32.xlu0 %v1272, 124
        %v1324 = vpop.permute.xlu0 %1323
        %1325 = vrot.lane.b32.xlu0 %v1273, 124
        %v1326 = vpop.permute.xlu0 %1325
        %1327 = vrot.lane.b32.xlu0 0.0, 124
        %v1328 = vpop.permute.xlu0 %1327
        %1329 = vrot.lane.b32.xlu0 %v1274, 124
        %v1330 = vpop.permute.xlu0 %1329
        %1331 = vrot.lane.b32.xlu0 %v1275, 124
        %v1332 = vpop.permute.xlu0 %1331
        %vm1333 = vcmask 1014784
        %v1334 = vsel %vm1333, %v1324, %v1326
        %v1335 = vsel %vm1333, %v1326, %v1328
        %v1336 = vsel %vm1333, %v1330, %v1332
        %v1337 = vsel %vm1333, %v1332, %v1328
        %v1342 = vsel %vm1321, %v1334, 0.0
        %v1343 = vsel %vm1322, %v1335, 0.0
        %v1344 = vsel %vm1321, %v1336, 0.0
        %v1345 = vsel %vm1322, %v1337, 0.0
        %v1346 = vld [vmem:[%s13] sm:$0xf]
        %v1347 = vld [vmem:[%s13 + $0x4] sm:$0xf]
        %v1348 = vpack.c.bf16 %v1311, %v1309
        %v1349 = vpack.c.bf16 %v1312, %v1310
        %v1350 = vpack.c.bf16 %v1274, %v1272
        %v1351 = vpack.c.bf16 %v1275, %v1273
        %v1352 = vpack.c.bf16 %v1344, %v1342
        %v1353 = vpack.c.bf16 %v1345, %v1343
        %v1354 = vld [vmem:[%s14] sm:$0xff]
        %v1355 = vld [vmem:[%s14 + $0x8] sm:$0xff]
        %1357 = vset.pattern.permute.xlu0 0
        %1358 = vperm.xlu0 %1357, %v1354
        %v1359 = vpop.permute.xlu0 %1358
        %1362 = vset.pattern.permute.xlu0 0
        %1363 = vperm.xlu0 %1362, %v1355
        %v1364 = vpop.permute.xlu0 %1363
        %v1368 = vunpack.c.l.b16 %v1346
        %v1369 = vunpack.c.l.b16 %v1347
        %v1370 = vpack.c.b16 %v1369, %v1368
        %v1372 = vsel %vm1144, %v1370, 0
        %1374 = vmatprep.subr.bf16.mxu0 %v1349
        %1375 = vmatpush1.bf16.msra.mxu0 %v1348
        %1376 = vmatprep.subr.bf16.mxu0 %v1351
        %1377 = vmatpush1.bf16.msra.mxu0 %v1350
        %1378 = vmatprep.subr.bf16.mxu0 %v1353
        %1379 = vmatpush1.bf16.msra.mxu0 %v1352
        %1380 = vmatprep.subr.bf16.mxu0 0
        %1381 = vmatpush1.bf16.msra.mxu0 0
        %1382 = vmatprep.subr.bf16.mxu0 0
        %1383 = vmatpush1.bf16.msra.mxu0 0
        %1384 = vmatprep.subr.bf16.mxu0 0
        %1385 = vmatpush1.bf16.msra.mxu0 0
        %1386 = vmatprep.subr.bf16.mxu0 0
        %1387 = vmatpush1.bf16.msra.mxu0 0
        %1388 = vmatprep.subr.bf16.mxu0 0
        %1389 = vmatpush1.bf16.msra.mxu0 0
        %1390 = vmatprep.subr.bf16.mxu0 0
        %1391 = vmatpush1.bf16.msra.mxu0 0
        %1392 = vmatprep.subr.bf16.mxu0 0
        %1393 = vmatpush1.bf16.msra.mxu0 0
        %1394 = vmatprep.subr.bf16.mxu0 0
        %1395 = vmatpush1.bf16.msra.mxu0 0
        %1396 = vmatprep.subr.bf16.mxu0 0
        %1397 = vmatpush1.bf16.msra.mxu0 0
        %1398 = vmatprep.subr.bf16.mxu0 0
        %1399 = vmatpush1.bf16.msra.mxu0 0
        %1400 = vmatprep.subr.bf16.mxu0 0
        %1401 = vmatpush1.bf16.msra.mxu0 0
        %1402 = vmatprep.subr.bf16.mxu0 0
        %1403 = vmatpush1.bf16.msra.mxu0 0
        %1404 = vmatprep.subr.bf16.mxu0 0
        %1405 = vmatpush1.bf16.msra.mxu0 0
        %1406 = vmatprep.mubr.bf16.mxu0 0
        %1407 = vmatmul.mubr.bf16.gmra.mrb[0].mxu0 %v1372
        %v1408 = vpop.f32.mrb[0].mxu0
        %v1409 = vadd.f32 %v1359, %v1408
        %v1410 = vpop.f32.mrb[0].mxu0
        %v1411 = vadd.f32 %v1359, %v1410
        %v1412 = vpop.f32.mrb[0].mxu0
        %v1413 = vadd.f32 %v1364, %v1412
        %v1414 = vpop.f32.mrb[0].mxu0
        %v1415 = vadd.f32 %v1364, %v1414
        %1416 = vdwg.mxu0
        %v1417 = vmax.f32 %v1409, 0.0
        %v1418 = vmax.f32 %v1411, 0.0
        %v1419 = vmax.f32 %v1413, 0.0
        %v1420 = vmax.f32 %v1415, 0.0
        %1425 = vrot.lane.b32.xlu0 %v1417, 4
        %v1426 = vpop.permute.xlu0 %1425
        %1427 = vrot.lane.b32.xlu0 %v1418, 4
        %v1428 = vpop.permute.xlu0 %1427
        %1429 = vrot.lane.b32.xlu0 %v1419, 4
        %v1430 = vpop.permute.xlu0 %1429
        %1431 = vrot.lane.b32.xlu0 %v1420, 4
        %v1432 = vpop.permute.xlu0 %1431
        %v1433 = vsel %vm1300, %v1291, %v1426
        %v1434 = vsel %vm1300, %v1426, %v1428
        %v1435 = vsel %vm1300, %v1291, %v1430
        %v1436 = vsel %vm1300, %v1430, %v1432
        %v1441 = vsel %vm1284, %v1433, 0.0
        %v1442 = vsel %vm1285, %v1434, 0.0
        %v1443 = vsel %vm1284, %v1435, 0.0
        %v1444 = vsel %vm1285, %v1436, 0.0
        %1445 = vrot.lane.b32.xlu0 %v1417, 124
        %v1446 = vpop.permute.xlu0 %1445
        %1447 = vrot.lane.b32.xlu0 %v1418, 124
        %v1448 = vpop.permute.xlu0 %1447
        %1449 = vrot.lane.b32.xlu0 %v1419, 124
        %v1450 = vpop.permute.xlu0 %1449
        %1451 = vrot.lane.b32.xlu0 %v1420, 124
        %v1452 = vpop.permute.xlu0 %1451
        %v1453 = vsel %vm1333, %v1446, %v1448
        %v1454 = vsel %vm1333, %v1448, %v1328
        %v1455 = vsel %vm1333, %v1450, %v1452
        %v1456 = vsel %vm1333, %v1452, %v1328
        %v1461 = vsel %vm1321, %v1453, 0.0
        %v1462 = vsel %vm1322, %v1454, 0.0
        %v1463 = vsel %vm1321, %v1455, 0.0
        %v1464 = vsel %vm1322, %v1456, 0.0
        %v1465 = vld [vmem:[%s15] sm:$0xf]
        %v1466 = vld [vmem:[%s15 + $0x4] sm:$0xf]
        %v1467 = vpack.c.bf16 %v1443, %v1441
        %v1468 = vpack.c.bf16 %v1444, %v1442
        %v1469 = vpack.c.bf16 %v1419, %v1417
        %v1470 = vpack.c.bf16 %v1420, %v1418
        %v1471 = vpack.c.bf16 %v1463, %v1461
        %v1472 = vpack.c.bf16 %v1464, %v1462
        %v1473 = vld [vmem:[%s16] sm:$0xff]
        %v1474 = vld [vmem:[%s16 + $0x8] sm:$0xff]
        %1476 = vset.pattern.permute.xlu0 0
        %1477 = vperm.xlu0 %1476, %v1473
        %v1478 = vpop.permute.xlu0 %1477
        %1481 = vset.pattern.permute.xlu0 0
        %1482 = vperm.xlu0 %1481, %v1474
        %v1483 = vpop.permute.xlu0 %1482
        %v1487 = vunpack.c.l.b16 %v1465
        %v1488 = vunpack.c.l.b16 %v1466
        %v1489 = vpack.c.b16 %v1488, %v1487
        %v1491 = vsel %vm1144, %v1489, 0
        %1493 = vmatprep.subr.bf16.mxu0 %v1468
        %1494 = vmatpush1.bf16.msra.mxu0 %v1467
        %1495 = vmatprep.subr.bf16.mxu0 %v1470
        %1496 = vmatpush1.bf16.msra.mxu0 %v1469
        %1497 = vmatprep.subr.bf16.mxu0 %v1472
        %1498 = vmatpush1.bf16.msra.mxu0 %v1471
        %1499 = vmatprep.subr.bf16.mxu0 0
        %1500 = vmatpush1.bf16.msra.mxu0 0
        %1501 = vmatprep.subr.bf16.mxu0 0
        %1502 = vmatpush1.bf16.msra.mxu0 0
        %1503 = vmatprep.subr.bf16.mxu0 0
        %1504 = vmatpush1.bf16.msra.mxu0 0
        %1505 = vmatprep.subr.bf16.mxu0 0
        %1506 = vmatpush1.bf16.msra.mxu0 0
        %1507 = vmatprep.subr.bf16.mxu0 0
        %1508 = vmatpush1.bf16.msra.mxu0 0
        %1509 = vmatprep.subr.bf16.mxu0 0
        %1510 = vmatpush1.bf16.msra.mxu0 0
        %1511 = vmatprep.subr.bf16.mxu0 0
        %1512 = vmatpush1.bf16.msra.mxu0 0
        %1513 = vmatprep.subr.bf16.mxu0 0
        %1514 = vmatpush1.bf16.msra.mxu0 0
        %1515 = vmatprep.subr.bf16.mxu0 0
        %1516 = vmatpush1.bf16.msra.mxu0 0
        %1517 = vmatprep.subr.bf16.mxu0 0
        %1518 = vmatpush1.bf16.msra.mxu0 0
        %1519 = vmatprep.subr.bf16.mxu0 0
        %1520 = vmatpush1.bf16.msra.mxu0 0
        %1521 = vmatprep.subr.bf16.mxu0 0
        %1522 = vmatpush1.bf16.msra.mxu0 0
        %1523 = vmatprep.subr.bf16.mxu0 0
        %1524 = vmatpush1.bf16.msra.mxu0 0
        %1525 = vmatprep.mubr.bf16.mxu0 0
        %1526 = vmatmul.mubr.bf16.gmra.mrb[0].mxu0 %v1491
        %v1527 = vpop.f32.mrb[0].mxu0
        %v1528 = vadd.f32 %v1478, %v1527
        %v1529 = vpop.f32.mrb[0].mxu0
        %v1530 = vadd.f32 %v1478, %v1529
        %v1531 = vpop.f32.mrb[0].mxu0
        %v1532 = vadd.f32 %v1483, %v1531
        %v1533 = vpop.f32.mrb[0].mxu0
        %v1534 = vadd.f32 %v1483, %v1533
        %1535 = vdwg.mxu0
        %v1536 = vmax.f32 %v1528, 0.0
        %v1537 = vmax.f32 %v1530, 0.0
        %v1538 = vmax.f32 %v1532, 0.0
        %v1539 = vmax.f32 %v1534, 0.0
        %v1540 = vadd.f32 %v1536, %v1272
        %v1541 = vadd.f32 %v1537, %v1273
        %v1542 = vadd.f32 %v1538, %v1274
        %v1543 = vadd.f32 %v1539, %v1275
        %v1544 = vmax.f32 %v1540, 0.0
        %v1545 = vmax.f32 %v1541, 0.0
        %v1546 = vmax.f32 %v1542, 0.0
        %v1547 = vmax.f32 %v1543, 0.0
        %1548 = vst [vmem:[%s643] sm:$0xff] %v1544
        %1549 = vst [vmem:[%s643 + $0x8] sm:$0xff] %v1545
        %1550 = vst [vmem:[%s643 + $0x10] sm:$0xff] %v1546
        %1551 = vst [vmem:[%s643 + $0x18] sm:$0xff] %v1547
        %s1552 = sand.u32 %s403, 1
        %s1553 = sand.u32 %s403, 1
        %s1554 = smul.addr %s1553, 32
        %s1555 = scalar_lea.vmem [#allocation15], %s1554
        // Predicated region
        $region121: #{temporal_conv_net.1} parent=87 // pred_check
          %p1556 = pneg %p413
        $region122: #{temporal_conv_net.1} parent=87 // pred_check_branch
          %1558 = sbr.rel (%p1556) target = $region124
        $region123: #{temporal_conv_net.1} parent=87 // pred_region
          %s1559 = smul.u32 2, %s33
          %s1560 = smul.addr %s1559, 8
          %s1561 = scalar_lea.vmem %s17, %s1560
          // Predicated region
          $region125: #{temporal_conv_net.1} parent=123 // pred_check
            _
          $region126: #{temporal_conv_net.1} parent=123 // pred_check_branch
            %1563 = sbr.rel (0) target = $region128
          $region127: #{temporal_conv_net.1} parent=123 // pred_region
            // Predicated region
            $region129: #{temporal_conv_net.1} parent=127 // pred_check
              _
            $region130: #{temporal_conv_net.1} parent=127 // pred_check_branch
              %1565 = sbr.rel (0) target = $region132
            $region131: #{temporal_conv_net.1} parent=127 // pred_region
              loop: start=0, step=1, limit=1
              $region133: #{temporal_conv_net.1} parent=131 // loop_pre_header
                _
              $region134: #{temporal_conv_net.1} parent=131 // loop_header
                %s1567 = sphi 0, %s1571
                %p1568 = scmp.ge.s32.totalorder %s1567, 1
                %s1572 = sphi %s1555, %s1555
                %s1573 = sphi %s1561, %s1561
              $region135: #{temporal_conv_net.1} parent=131 // loop_header_branch
                %1570 = sbr.rel (%p1568) target = $region139
              $region136: #{temporal_conv_net.1} parent=131 // loop_body
                %v1574 = vld [vmem:[%s1572] sm:$0xff]
                %1575 = vst [vmem:[%s1573] sm:$0xff] %v1574
                %v1576 = vld [vmem:[%s1572 + $0x8] sm:$0xff]
                %1577 = vst [vmem:[%s1573 + $0x8] sm:$0xff] %v1576
                %v1578 = vld [vmem:[%s1572 + $0x10] sm:$0xff]
                %1579 = vst [vmem:[%s1573 + $0x20] sm:$0xff] %v1578
                %v1580 = vld [vmem:[%s1572 + $0x18] sm:$0xff]
                %1581 = vst [vmem:[%s1573 + $0x28] sm:$0xff] %v1580
              $region137: #{temporal_conv_net.1} parent=131 // loop_footer
                %s1571 = sadd.s32 1, %s1567
              $region138: #{temporal_conv_net.1} parent=131 // loop_footer_branch
                %1566 = sbr.rel target = $region134
              $region139: #{temporal_conv_net.1} parent=131 // loop_exit
                _
            $region132: #{temporal_conv_net.1} parent=127 // pred_fallthru
              _
            // Predicated region
            $region140: #{temporal_conv_net.1} parent=127 // pred_check
              _
            $region141: #{temporal_conv_net.1} parent=127 // pred_check_branch
              %1583 = sbr.rel target = $region143
            $region142: #{temporal_conv_net.1} parent=127 // pred_region
              _
            $region143: #{temporal_conv_net.1} parent=127 // pred_fallthru
              _
          $region128: #{temporal_conv_net.1} parent=123 // pred_fallthru
            _
          %1584 = vnop
        $region124: #{temporal_conv_net.1} parent=87 // pred_fallthru
          _
      $region88: #{temporal_conv_net.1} parent=5 // pred_fallthru
        _
      %p1585 = scmp.le.s32.totalorder 2, %s28
      // Predicated region
      $region144: #{temporal_conv_net.1} parent=5 // pred_check
        %p1586 = pneg %p1585
      $region145: #{temporal_conv_net.1} parent=5 // pred_check_branch
        %1588 = sbr.rel (%p1586) target = $region147
      $region146: #{temporal_conv_net.1} parent=5 // pred_region
        %s1589 = ssub.s32 %s28, 2
        // Predicated region
        $region148: #{temporal_conv_net.1} parent=146 // pred_check
          %p1590 = pneg %p419
        $region149: #{temporal_conv_net.1} parent=146 // pred_check_branch
          %1592 = sbr.rel (%p1590) target = $region151
        $region150: #{temporal_conv_net.1} parent=146 // pred_region
          %s1593 = sand.u32 %s404, 1
          %s1594 = sand.u32 %s404, 1
          %s1595 = smul.addr %s1594, 32
          %s1596 = scalar_lea.vmem [#allocation15], %s1595
        $region151: #{temporal_conv_net.1} parent=146 // pred_fallthru
          _
      $region147: #{temporal_conv_net.1} parent=5 // pred_fallthru
        _
    $region6: #{temporal_conv_net.1} parent=1 // loop_footer
      %s32 = sadd.s32 1, %s28
    $region7: #{temporal_conv_net.1} parent=1 // loop_footer_branch
      %27 = sbr.rel target = $region3
    $region8: #{temporal_conv_net.1} parent=1 // loop_exit
      _
    %1597 = vsyncpa [#allocation3], 1
    %s1598 = scalar_lea.sflag [#allocation3], 1
    %1599 = vsyncpa %s1598, 1
    %1600 = vsyncpa [#allocation5], 1
    %1601 = vsyncpa [#allocation8], 1
    %1602 = vsyncpa [#allocation11], 1
    %1603 = vsyncpa [#allocation14], 1

</llo_original>
